<compile_context>
chip_gen: v7x
topology: tpu7x:2x2x1
jax: 0.10.0
libtpu: 0.0.40
codegen_flags: <defaults>
</compile_context>

<pallas_src>
import math
import functools

import jax
import jax.numpy as jnp
from jax.experimental import pallas as pl
from jax.experimental.pallas import tpu as pltpu


# ----------------------------------------------------------------------------
# Fused TextEncoder-core kernel: MHA(x, x, x) -> AdditiveAttention pooling.
# Single grid step; static loops over (batch, head).
# ----------------------------------------------------------------------------
def _text_encoder_kernel(x_ref, wqkv_ref, bqkv_ref,
                         w1_ref, b1_ref, w2_ref, b2_ref,
                         o_ref, *, B, S, n_heads, dkp, dvp):
    x = x_ref[...]            # (B*S, d_model)        bf16
    wqkv = wqkv_ref[...]      # (d_model, 3*H*dkp)    bf16 (Wq pre-scaled by 1/sqrt(d_k))
    bqkv = bqkv_ref[...]      # (1, 3*H*dkp)          f32  (bq pre-scaled)
    w1 = w1_ref[...]          # (H*dvp, hidden)       bf16 (rows zero-padded per head)
    b1 = b1_ref[...]          # (1, hidden)           f32
    w2 = w2_ref[...]          # (1, hidden)           f32  (row form of fc2 weight)
    b2 = b2_ref[...]          # (1, 1)                f32

    Hk = n_heads * dkp
    Hv = n_heads * dvp

    # One fused QKV projection for ALL batches and heads (lane-dense N = 3*128).
    proj = jnp.dot(x, wqkv, preferred_element_type=jnp.float32) + bqkv   # (B*S, 3*Hk) f32
    proj_b = proj.astype(jnp.bfloat16)                                   # single hoisted cast

    q_all = proj_b[:, :Hk]                # (B*S, 128) bf16, 128-aligned lane slice
    k_all = proj_b[:, Hk:2 * Hk]          # (B*S, 128) bf16
    v_all = proj_b[:, 2 * Hk:2 * Hk + Hv] # (B*S, 128) bf16

    pooled_rows = []
    for b in range(B):                                     # static unroll (B small)
        r0 = b * S
        ctx_heads = []
        for h in range(n_heads):                           # static unroll (heads tiny)
            ck = h * dkp
            cv = h * dvp
            q_bh = q_all[r0:r0 + S, ck:ck + dkp]           # (S, dkp) bf16, 32-aligned
            k_bh = k_all[r0:r0 + S, ck:ck + dkp]
            v_bh = v_all[r0:r0 + S, cv:cv + dvp]

            # Q K^T via contraction on the shared d_k axis (no explicit transpose);
            # 1/sqrt(d_k) already folded into Wq.
            s = jax.lax.dot_general(q_bh, k_bh, (((1,), (1,)), ((), ())),
                                    preferred_element_type=jnp.float32)  # (S, S) f32
            scores = jnp.exp(s)
            denom = jnp.sum(scores, axis=-1, keepdims=True) + 1e-8
            attn = scores * pl.reciprocal(denom, approx=True)
            ctx_bh = jnp.dot(attn.astype(jnp.bfloat16), v_bh,
                             preferred_element_type=jnp.float32)         # (S, dvp) f32
            ctx_heads.append(ctx_bh)

        ctx_b = jnp.concatenate(ctx_heads, axis=-1)        # (S, H*dvp) f32, in VMEM only

        # ---- AdditiveAttention pooling, fused (ctx never written to HBM) ----
        e = jnp.tanh(jnp.dot(ctx_b.astype(jnp.bfloat16), w1,
                             preferred_element_type=jnp.float32) + b1)   # (S, hidden)
        logit = jnp.sum(e * w2, axis=-1, keepdims=True) + b2             # (S, 1)
        alpha = jnp.exp(logit)
        adenom = jnp.sum(alpha, axis=0, keepdims=True) + 1e-8            # (1, 1)
        alpha = alpha * pl.reciprocal(adenom, approx=True)
        pooled_rows.append(jnp.sum(ctx_b * alpha, axis=0, keepdims=True))  # (1, H*dvp)

    # Lane-dense (B, 128) store; un-padding to (B, 80) happens in the wrapper.
    o_ref[...] = jnp.concatenate(pooled_rows, axis=0).astype(o_ref.dtype)


def text_encoder_core(x, mha_params, add_params, *, n_heads, d_k, d_v, d_pad=32):
    """Fused Pallas forward for the TextEncoder core at inference
    (dropout = identity), minus the external encoder_model:

        ctx   = MultiHeadAttention(x, x, x)          # (B, S, n_heads*d_v)
        pooled = AdditiveAttention(ctx)              # (B, n_heads*d_v)

    x: (B, S, d_model) f32.  Returns (B, n_heads*d_v) f32 in the PyTorch layout.
    """
    B, S, d_model = x.shape
    wq, bq, wk, bk, wv, bv = mha_params
    w1, b1, w2, b2 = add_params
    hidden = w1.shape[1]
    dkp = dvp = d_pad
    assert d_pad >= d_k and d_pad >= d_v
    scale = 1.0 / math.sqrt(d_k)

    def pad_w(w, d, dp):
        # (d_model, H*d) -> (d_model, H*dp), zero-padding each head's columns.
        w3 = w.reshape(d_model, n_heads, d)
        return jnp.pad(w3, ((0, 0), (0, 0), (0, dp - d))).reshape(d_model, n_heads * dp)

    def pad_b(bvec, d, dp):
        b3 = bvec.reshape(n_heads, d)
        return jnp.pad(b3, ((0, 0), (0, dp - d))).reshape(n_heads * dp)

    # Fold 1/sqrt(d_k) into Wq / bq at the cast; pad heads to lane-aligned width.
    wq_p = pad_w(wq * scale, d_k, dkp)
    wk_p = pad_w(wk, d_k, dkp)
    wv_p = pad_w(wv, d_v, dvp)
    bq_p = pad_b(bq * scale, d_k, dkp)
    bk_p = pad_b(bk, d_k, dkp)
    bv_p = pad_b(bv, d_v, dvp)

    wqkv = jnp.concatenate([wq_p, wk_p, wv_p], axis=1).astype(jnp.bfloat16)
    bqkv = jnp.concatenate([bq_p, bk_p, bv_p]).reshape(1, -1).astype(jnp.float32)

    # Zero-pad W1's input rows per head so the padded ctx feeds it directly.
    w1_p = jnp.pad(w1.reshape(n_heads, d_v, hidden),
                   ((0, 0), (0, dvp - d_v), (0, 0))
                   ).reshape(n_heads * dvp, hidden).astype(jnp.bfloat16)
    b1_r = b1.reshape(1, hidden).astype(jnp.float32)
    w2_r = w2.reshape(1, hidden).astype(jnp.float32)
    b2_r = jnp.asarray(b2, jnp.float32).reshape(1, 1)

    # Deduped self-attention input, flattened over (B*S) rows, bf16 MXU operand.
    x_flat = x.reshape(B * S, d_model).astype(jnp.bfloat16)

    kernel = functools.partial(_text_encoder_kernel,
                               B=B, S=S, n_heads=n_heads, dkp=dkp, dvp=dvp)

    pooled_padded = pl.pallas_call(
        kernel,
        out_shape=jax.ShapeDtypeStruct((B, n_heads * dvp), jnp.float32),
        compiler_params=pltpu.CompilerParams(vmem_limit_bytes=32 * 1024 * 1024),
    )(x_flat, wqkv, bqkv, w1_p, b1_r, w2_r, b2_r)

    # Un-pad per-head lanes back to the PyTorch (B, n_heads*d_v) layout.
    return pooled_padded.reshape(B, n_heads, dvp)[:, :, :d_v].reshape(B, n_heads * d_v)


# ----------------------------------------------------------------------------
# Parameter init (deterministic, mirrors the module's init scheme).
# ----------------------------------------------------------------------------
def init_mha_params(key, d_model, n_heads, d_k, d_v):
    """xavier_uniform_ weights (stored transposed (in, out)), default Linear biases."""
    ks = jax.random.split(key, 6)

    def xavier(k, fan_in, fan_out):
        bound = math.sqrt(6.0 / (fan_in + fan_out))
        return jax.random.uniform(k, (fan_in, fan_out), jnp.float32, -bound, bound)

    def bias(k, fan_in, n_out):
        bound = 1.0 / math.sqrt(fan_in)
        return jax.random.uniform(k, (n_out,), jnp.float32, -bound, bound)

    wq = xavier(ks[0], d_model, d_k * n_heads)
    bq = bias(ks[1], d_model, d_k * n_heads)
    wk = xavier(ks[2], d_model, d_k * n_heads)
    bk = bias(ks[3], d_model, d_k * n_heads)
    wv = xavier(ks[4], d_model, d_v * n_heads)
    bv = bias(ks[5], d_model, d_v * n_heads)
    return (wq, bq, wk, bk, wv, bv)


def init_additive_params(key, d_h, hidden):
    ks = jax.random.split(key, 4)
    b1_bound = 1.0 / math.sqrt(d_h)
    b2_bound = 1.0 / math.sqrt(hidden)
    w1 = jax.random.uniform(ks[0], (d_h, hidden), jnp.float32, -b1_bound, b1_bound)
    b1 = jax.random.uniform(ks[1], (hidden,), jnp.float32, -b1_bound, b1_bound)
    w2 = jax.random.uniform(ks[2], (hidden, 1), jnp.float32, -b2_bound, b2_bound)
    b2 = jax.random.uniform(ks[3], (1,), jnp.float32, -b2_bound, b2_bound)
    return (w1, b1, w2, b2)


# ----------------------------------------------------------------------------
# Pure-JAX references (replicate the PyTorch forward; optional bf16 policy).
# ----------------------------------------------------------------------------
def mha_reference(Q, K, V, params, *, n_heads, d_k, d_v, bf16_matmuls=False):
    B, S, _ = Q.shape
    wq, bq, wk, bk, wv, bv = params
    lo = jnp.bfloat16 if bf16_matmuls else jnp.float32

    def proj(x, w, b, d):
        y = jnp.dot(x.astype(lo), w.astype(lo),
                    preferred_element_type=jnp.float32) + b
        return y.reshape(B, S, n_heads, d).transpose(0, 2, 1, 3)

    q_s = proj(Q, wq, bq, d_k)
    k_s = proj(K, wk, bk, d_k)
    v_s = proj(V, wv, bv, d_v)
    s = jnp.einsum('bhqd,bhkd->bhqk', q_s.astype(lo), k_s.astype(lo),
                   preferred_element_type=jnp.float32) / math.sqrt(d_k)
    scores = jnp.exp(s)
    attn = scores / (jnp.sum(scores, axis=-1, keepdims=True) + 1e-8)
    ctx = jnp.einsum('bhqk,bhkd->bhqd', attn.astype(lo), v_s.astype(lo),
                     preferred_element_type=jnp.float32)
    return ctx.transpose(0, 2, 1, 3).reshape(B, S, n_heads * d_v)


def additive_reference(x, params, *, bf16_matmuls=False):
    w1, b1, w2, b2 = params
    lo = jnp.bfloat16 if bf16_matmuls else jnp.float32
    e = jnp.tanh(jnp.dot(x.astype(lo), w1.astype(lo),
                         preferred_element_type=jnp.float32) + b1)   # (B, S, hidden)
    alpha = jnp.exp(jnp.dot(e, w2) + b2)                             # (B, S, 1)
    alpha = alpha / (jnp.sum(alpha, axis=1, keepdims=True) + 1e-8)
    return jnp.sum(x * alpha, axis=1)                                # (B, d_h)


def text_encoder_reference(x, mha_params, add_params, *, n_heads, d_k, d_v,
                           bf16_matmuls=False):
    ctx = mha_reference(x, x, x, mha_params, n_heads=n_heads, d_k=d_k, d_v=d_v,
                        bf16_matmuls=bf16_matmuls)
    return additive_reference(ctx, add_params, bf16_matmuls=bf16_matmuls)


# ----------------------------------------------------------------------------
if __name__ == "__main__":
    # Small shapes consistent with the module (TextEncoder hard-codes d_k=d_v=20).
    B, S, d_model = 2, 8, 32          # batch, seq (num words), word_embedding_dim
    n_heads, d_k, d_v = 4, 20, 20     # num_attention_heads, per-head dims
    hidden = 32                       # news_query_vector_dim for AdditiveAttention
    d_h = n_heads * d_v

    key = jax.random.PRNGKey(0)
    kx, kp, ka = jax.random.split(key, 3)
    x = jax.random.normal(kx, (B, S, d_model), jnp.float32)   # word embeddings
    mha_params = init_mha_params(kp, d_model, n_heads, d_k, d_v)
    add_params = init_additive_params(ka, d_h, hidden)

    # Run the fused Pallas kernel (MHA self-attention + additive pooling).
    pooled = text_encoder_core(x, mha_params, add_params,
                               n_heads=n_heads, d_k=d_k, d_v=d_v)
    pooled = jax.block_until_ready(pooled)

    # References: same precision policy (tight check) and pure f32 (fidelity check).
    ref_policy = text_encoder_reference(x, mha_params, add_params,
                                        n_heads=n_heads, d_k=d_k, d_v=d_v,
                                        bf16_matmuls=True)
    ref_f32 = text_encoder_reference(x, mha_params, add_params,
                                     n_heads=n_heads, d_k=d_k, d_v=d_v,
                                     bf16_matmuls=False)

    assert pooled.shape == (B, d_h)
    assert jnp.allclose(pooled, ref_policy, atol=2e-2, rtol=2e-2)
    assert jnp.allclose(pooled, ref_f32, atol=1e-1, rtol=1e-1)

    print("KERNEL_OK")
</pallas_src>

<mosaic_0001>
module attributes {stable_mosaic.version = 11 : i64} {
  func.func @_text_encoder_kernel(%arg0: memref<16x32xbf16, #tpu.memory_space<vmem>>, %arg1: memref<32x384xbf16, #tpu.memory_space<vmem>>, %arg2: memref<1x384xf32, #tpu.memory_space<vmem>>, %arg3: memref<128x32xbf16, #tpu.memory_space<vmem>>, %arg4: memref<1x32xf32, #tpu.memory_space<vmem>>, %arg5: memref<1x32xf32, #tpu.memory_space<vmem>>, %arg6: memref<1x1xf32, #tpu.memory_space<vmem>>, %arg7: memref<2x128xf32, #tpu.memory_space<vmem>>) attributes {dimension_semantics = [], scalar_prefetch = 0 : i64, scratch_operands = 0 : i64, tpu.core_type = #tpu.core_type<tc>} {
    %c0 = arith.constant 0 : index
    %c0_0 = arith.constant 0 : index
    %0 = vector.load %arg0[%c0, %c0_0] : memref<16x32xbf16, #tpu.memory_space<vmem>>, vector<16x32xbf16>
    %c0_1 = arith.constant 0 : index
    %c0_2 = arith.constant 0 : index
    %1 = vector.load %arg1[%c0_1, %c0_2] : memref<32x384xbf16, #tpu.memory_space<vmem>>, vector<32x384xbf16>
    %c0_3 = arith.constant 0 : index
    %c0_4 = arith.constant 0 : index
    %2 = vector.load %arg2[%c0_3, %c0_4] : memref<1x384xf32, #tpu.memory_space<vmem>>, vector<1x384xf32>
    %c0_5 = arith.constant 0 : index
    %c0_6 = arith.constant 0 : index
    %3 = vector.load %arg3[%c0_5, %c0_6] : memref<128x32xbf16, #tpu.memory_space<vmem>>, vector<128x32xbf16>
    %c0_7 = arith.constant 0 : index
    %c0_8 = arith.constant 0 : index
    %4 = vector.load %arg4[%c0_7, %c0_8] : memref<1x32xf32, #tpu.memory_space<vmem>>, vector<1x32xf32>
    %c0_9 = arith.constant 0 : index
    %c0_10 = arith.constant 0 : index
    %5 = vector.load %arg5[%c0_9, %c0_10] : memref<1x32xf32, #tpu.memory_space<vmem>>, vector<1x32xf32>
    %c0_11 = arith.constant 0 : index
    %c0_12 = arith.constant 0 : index
    %6 = vector.load %arg6[%c0_11, %c0_12] : memref<1x1xf32, #tpu.memory_space<vmem>>, vector<1x1xf32>
    %cst = arith.constant dense<0.000000e+00> : vector<16x384xf32>
    %7 = tpu.matmul %0, %1, %cst {dimension_numbers = #tpu.dot_dimension_numbers<[1], [0], [0], [1], [0, 0, 1, 1], [], []>} : vector<16x32xbf16>, vector<32x384xbf16>, vector<16x384xf32> -> vector<16x384xf32>
    %8 = vector.broadcast %2 : vector<1x384xf32> to vector<16x384xf32>
    %9 = arith.addf %7, %8 : vector<16x384xf32>
    %10 = arith.truncf %9 : vector<16x384xf32> to vector<16x384xbf16>
    %11 = vector.extract_strided_slice %10 {offsets = [0, 0], sizes = [16, 128], strides = [1, 1]} : vector<16x384xbf16> to vector<16x128xbf16>
    %12 = vector.extract_strided_slice %10 {offsets = [0, 128], sizes = [16, 128], strides = [1, 1]} : vector<16x384xbf16> to vector<16x128xbf16>
    %13 = vector.extract_strided_slice %10 {offsets = [0, 256], sizes = [16, 128], strides = [1, 1]} : vector<16x384xbf16> to vector<16x128xbf16>
    %14 = vector.extract_strided_slice %11 {offsets = [0, 0], sizes = [8, 32], strides = [1, 1]} : vector<16x128xbf16> to vector<8x32xbf16>
    %15 = vector.extract_strided_slice %12 {offsets = [0, 0], sizes = [8, 32], strides = [1, 1]} : vector<16x128xbf16> to vector<8x32xbf16>
    %16 = vector.extract_strided_slice %13 {offsets = [0, 0], sizes = [8, 32], strides = [1, 1]} : vector<16x128xbf16> to vector<8x32xbf16>
    %cst_13 = arith.constant dense<0.000000e+00> : vector<8x8xf32>
    %17 = tpu.matmul %14, %15, %cst_13 {dimension_numbers = #tpu.dot_dimension_numbers<[1], [1], [0], [0], [0, 0, 1, 0], [], []>} : vector<8x32xbf16>, vector<8x32xbf16>, vector<8x8xf32> -> vector<8x8xf32>
    %18 = math.exp %17 : vector<8x8xf32>
    %cst_14 = arith.constant dense<0.000000e+00> : vector<8xf32>
    %19 = vector.multi_reduction <add>, %18, %cst_14 [1] : vector<8x8xf32> to vector<8xf32>
    %20 = vector.shape_cast %19 : vector<8xf32> to vector<8x1xf32>
    %cst_15 = arith.constant 9.99999993E-9 : f32
    %21 = vector.broadcast %cst_15 : f32 to vector<8x1xf32>
    %22 = arith.addf %20, %21 : vector<8x1xf32>
    %23 = tpu.reciprocal %22 {approx = true} : vector<8x1xf32> -> vector<8x1xf32>
    %24 = vector.broadcast %23 : vector<8x1xf32> to vector<8x8xf32>
    %25 = arith.mulf %18, %24 : vector<8x8xf32>
    %26 = arith.truncf %25 : vector<8x8xf32> to vector<8x8xbf16>
    %cst_16 = arith.constant dense<0.000000e+00> : vector<8x32xf32>
    %27 = tpu.matmul %26, %16, %cst_16 {dimension_numbers = #tpu.dot_dimension_numbers<[1], [0], [0], [1], [0, 0, 1, 1], [], []>} : vector<8x8xbf16>, vector<8x32xbf16>, vector<8x32xf32> -> vector<8x32xf32>
    %28 = vector.extract_strided_slice %11 {offsets = [0, 32], sizes = [8, 32], strides = [1, 1]} : vector<16x128xbf16> to vector<8x32xbf16>
    %29 = vector.extract_strided_slice %12 {offsets = [0, 32], sizes = [8, 32], strides = [1, 1]} : vector<16x128xbf16> to vector<8x32xbf16>
    %30 = vector.extract_strided_slice %13 {offsets = [0, 32], sizes = [8, 32], strides = [1, 1]} : vector<16x128xbf16> to vector<8x32xbf16>
    %cst_17 = arith.constant dense<0.000000e+00> : vector<8x8xf32>
    %31 = tpu.matmul %28, %29, %cst_17 {dimension_numbers = #tpu.dot_dimension_numbers<[1], [1], [0], [0], [0, 0, 1, 0], [], []>} : vector<8x32xbf16>, vector<8x32xbf16>, vector<8x8xf32> -> vector<8x8xf32>
    %32 = math.exp %31 : vector<8x8xf32>
    %cst_18 = arith.constant dense<0.000000e+00> : vector<8xf32>
    %33 = vector.multi_reduction <add>, %32, %cst_18 [1] : vector<8x8xf32> to vector<8xf32>
    %34 = vector.shape_cast %33 : vector<8xf32> to vector<8x1xf32>
    %cst_19 = arith.constant 9.99999993E-9 : f32
    %35 = vector.broadcast %cst_19 : f32 to vector<8x1xf32>
    %36 = arith.addf %34, %35 : vector<8x1xf32>
    %37 = tpu.reciprocal %36 {approx = true} : vector<8x1xf32> -> vector<8x1xf32>
    %38 = vector.broadcast %37 : vector<8x1xf32> to vector<8x8xf32>
    %39 = arith.mulf %32, %38 : vector<8x8xf32>
    %40 = arith.truncf %39 : vector<8x8xf32> to vector<8x8xbf16>
    %cst_20 = arith.constant dense<0.000000e+00> : vector<8x32xf32>
    %41 = tpu.matmul %40, %30, %cst_20 {dimension_numbers = #tpu.dot_dimension_numbers<[1], [0], [0], [1], [0, 0, 1, 1], [], []>} : vector<8x8xbf16>, vector<8x32xbf16>, vector<8x32xf32> -> vector<8x32xf32>
    %42 = vector.extract_strided_slice %11 {offsets = [0, 64], sizes = [8, 32], strides = [1, 1]} : vector<16x128xbf16> to vector<8x32xbf16>
    %43 = vector.extract_strided_slice %12 {offsets = [0, 64], sizes = [8, 32], strides = [1, 1]} : vector<16x128xbf16> to vector<8x32xbf16>
    %44 = vector.extract_strided_slice %13 {offsets = [0, 64], sizes = [8, 32], strides = [1, 1]} : vector<16x128xbf16> to vector<8x32xbf16>
    %cst_21 = arith.constant dense<0.000000e+00> : vector<8x8xf32>
    %45 = tpu.matmul %42, %43, %cst_21 {dimension_numbers = #tpu.dot_dimension_numbers<[1], [1], [0], [0], [0, 0, 1, 0], [], []>} : vector<8x32xbf16>, vector<8x32xbf16>, vector<8x8xf32> -> vector<8x8xf32>
    %46 = math.exp %45 : vector<8x8xf32>
    %cst_22 = arith.constant dense<0.000000e+00> : vector<8xf32>
    %47 = vector.multi_reduction <add>, %46, %cst_22 [1] : vector<8x8xf32> to vector<8xf32>
    %48 = vector.shape_cast %47 : vector<8xf32> to vector<8x1xf32>
    %cst_23 = arith.constant 9.99999993E-9 : f32
    %49 = vector.broadcast %cst_23 : f32 to vector<8x1xf32>
    %50 = arith.addf %48, %49 : vector<8x1xf32>
    %51 = tpu.reciprocal %50 {approx = true} : vector<8x1xf32> -> vector<8x1xf32>
    %52 = vector.broadcast %51 : vector<8x1xf32> to vector<8x8xf32>
    %53 = arith.mulf %46, %52 : vector<8x8xf32>
    %54 = arith.truncf %53 : vector<8x8xf32> to vector<8x8xbf16>
    %cst_24 = arith.constant dense<0.000000e+00> : vector<8x32xf32>
    %55 = tpu.matmul %54, %44, %cst_24 {dimension_numbers = #tpu.dot_dimension_numbers<[1], [0], [0], [1], [0, 0, 1, 1], [], []>} : vector<8x8xbf16>, vector<8x32xbf16>, vector<8x32xf32> -> vector<8x32xf32>
    %56 = vector.extract_strided_slice %11 {offsets = [0, 96], sizes = [8, 32], strides = [1, 1]} : vector<16x128xbf16> to vector<8x32xbf16>
    %57 = vector.extract_strided_slice %12 {offsets = [0, 96], sizes = [8, 32], strides = [1, 1]} : vector<16x128xbf16> to vector<8x32xbf16>
    %58 = vector.extract_strided_slice %13 {offsets = [0, 96], sizes = [8, 32], strides = [1, 1]} : vector<16x128xbf16> to vector<8x32xbf16>
    %cst_25 = arith.constant dense<0.000000e+00> : vector<8x8xf32>
    %59 = tpu.matmul %56, %57, %cst_25 {dimension_numbers = #tpu.dot_dimension_numbers<[1], [1], [0], [0], [0, 0, 1, 0], [], []>} : vector<8x32xbf16>, vector<8x32xbf16>, vector<8x8xf32> -> vector<8x8xf32>
    %60 = math.exp %59 : vector<8x8xf32>
    %cst_26 = arith.constant dense<0.000000e+00> : vector<8xf32>
    %61 = vector.multi_reduction <add>, %60, %cst_26 [1] : vector<8x8xf32> to vector<8xf32>
    %62 = vector.shape_cast %61 : vector<8xf32> to vector<8x1xf32>
    %cst_27 = arith.constant 9.99999993E-9 : f32
    %63 = vector.broadcast %cst_27 : f32 to vector<8x1xf32>
    %64 = arith.addf %62, %63 : vector<8x1xf32>
    %65 = tpu.reciprocal %64 {approx = true} : vector<8x1xf32> -> vector<8x1xf32>
    %66 = vector.broadcast %65 : vector<8x1xf32> to vector<8x8xf32>
    %67 = arith.mulf %60, %66 : vector<8x8xf32>
    %68 = arith.truncf %67 : vector<8x8xf32> to vector<8x8xbf16>
    %cst_28 = arith.constant dense<0.000000e+00> : vector<8x32xf32>
    %69 = tpu.matmul %68, %58, %cst_28 {dimension_numbers = #tpu.dot_dimension_numbers<[1], [0], [0], [1], [0, 0, 1, 1], [], []>} : vector<8x8xbf16>, vector<8x32xbf16>, vector<8x32xf32> -> vector<8x32xf32>
    %70 = tpu.concatenate %27, %41, %55, %69 in 1 : vector<8x32xf32>, vector<8x32xf32>, vector<8x32xf32>, vector<8x32xf32> -> vector<8x128xf32>
    %71 = arith.truncf %70 : vector<8x128xf32> to vector<8x128xbf16>
    %cst_29 = arith.constant dense<0.000000e+00> : vector<8x32xf32>
    %72 = tpu.matmul %71, %3, %cst_29 {dimension_numbers = #tpu.dot_dimension_numbers<[1], [0], [0], [1], [0, 0, 1, 1], [], []>} : vector<8x128xbf16>, vector<128x32xbf16>, vector<8x32xf32> -> vector<8x32xf32>
    %73 = vector.broadcast %4 : vector<1x32xf32> to vector<8x32xf32>
    %74 = arith.addf %72, %73 : vector<8x32xf32>
    %75 = math.tanh %74 : vector<8x32xf32>
    %76 = vector.broadcast %5 : vector<1x32xf32> to vector<8x32xf32>
    %77 = arith.mulf %75, %76 : vector<8x32xf32>
    %cst_30 = arith.constant dense<0.000000e+00> : vector<8xf32>
    %78 = vector.multi_reduction <add>, %77, %cst_30 [1] : vector<8x32xf32> to vector<8xf32>
    %79 = vector.shape_cast %78 : vector<8xf32> to vector<8x1xf32>
    %80 = vector.broadcast %6 : vector<1x1xf32> to vector<8x1xf32>
    %81 = arith.addf %79, %80 : vector<8x1xf32>
    %82 = math.exp %81 : vector<8x1xf32>
    %cst_31 = arith.constant dense<0.000000e+00> : vector<1xf32>
    %83 = vector.multi_reduction <add>, %82, %cst_31 [0] : vector<8x1xf32> to vector<1xf32>
    %84 = vector.shape_cast %83 : vector<1xf32> to vector<1x1xf32>
    %cst_32 = arith.constant 9.99999993E-9 : f32
    %85 = vector.broadcast %cst_32 : f32 to vector<1x1xf32>
    %86 = arith.addf %84, %85 : vector<1x1xf32>
    %87 = tpu.reciprocal %86 {approx = true} : vector<1x1xf32> -> vector<1x1xf32>
    %88 = vector.broadcast %87 : vector<1x1xf32> to vector<8x1xf32>
    %89 = arith.mulf %82, %88 : vector<8x1xf32>
    %90 = vector.broadcast %89 : vector<8x1xf32> to vector<8x128xf32>
    %91 = arith.mulf %70, %90 : vector<8x128xf32>
    %cst_33 = arith.constant dense<0.000000e+00> : vector<128xf32>
    %92 = vector.multi_reduction <add>, %91, %cst_33 [0] : vector<8x128xf32> to vector<128xf32>
    %93 = vector.shape_cast %92 : vector<128xf32> to vector<1x128xf32>
    %94 = vector.extract_strided_slice %11 {offsets = [8, 0], sizes = [8, 32], strides = [1, 1]} : vector<16x128xbf16> to vector<8x32xbf16>
    %95 = vector.extract_strided_slice %12 {offsets = [8, 0], sizes = [8, 32], strides = [1, 1]} : vector<16x128xbf16> to vector<8x32xbf16>
    %96 = vector.extract_strided_slice %13 {offsets = [8, 0], sizes = [8, 32], strides = [1, 1]} : vector<16x128xbf16> to vector<8x32xbf16>
    %cst_34 = arith.constant dense<0.000000e+00> : vector<8x8xf32>
    %97 = tpu.matmul %94, %95, %cst_34 {dimension_numbers = #tpu.dot_dimension_numbers<[1], [1], [0], [0], [0, 0, 1, 0], [], []>} : vector<8x32xbf16>, vector<8x32xbf16>, vector<8x8xf32> -> vector<8x8xf32>
    %98 = math.exp %97 : vector<8x8xf32>
    %cst_35 = arith.constant dense<0.000000e+00> : vector<8xf32>
    %99 = vector.multi_reduction <add>, %98, %cst_35 [1] : vector<8x8xf32> to vector<8xf32>
    %100 = vector.shape_cast %99 : vector<8xf32> to vector<8x1xf32>
    %cst_36 = arith.constant 9.99999993E-9 : f32
    %101 = vector.broadcast %cst_36 : f32 to vector<8x1xf32>
    %102 = arith.addf %100, %101 : vector<8x1xf32>
    %103 = tpu.reciprocal %102 {approx = true} : vector<8x1xf32> -> vector<8x1xf32>
    %104 = vector.broadcast %103 : vector<8x1xf32> to vector<8x8xf32>
    %105 = arith.mulf %98, %104 : vector<8x8xf32>
    %106 = arith.truncf %105 : vector<8x8xf32> to vector<8x8xbf16>
    %cst_37 = arith.constant dense<0.000000e+00> : vector<8x32xf32>
    %107 = tpu.matmul %106, %96, %cst_37 {dimension_numbers = #tpu.dot_dimension_numbers<[1], [0], [0], [1], [0, 0, 1, 1], [], []>} : vector<8x8xbf16>, vector<8x32xbf16>, vector<8x32xf32> -> vector<8x32xf32>
    %108 = vector.extract_strided_slice %11 {offsets = [8, 32], sizes = [8, 32], strides = [1, 1]} : vector<16x128xbf16> to vector<8x32xbf16>
    %109 = vector.extract_strided_slice %12 {offsets = [8, 32], sizes = [8, 32], strides = [1, 1]} : vector<16x128xbf16> to vector<8x32xbf16>
    %110 = vector.extract_strided_slice %13 {offsets = [8, 32], sizes = [8, 32], strides = [1, 1]} : vector<16x128xbf16> to vector<8x32xbf16>
    %cst_38 = arith.constant dense<0.000000e+00> : vector<8x8xf32>
    %111 = tpu.matmul %108, %109, %cst_38 {dimension_numbers = #tpu.dot_dimension_numbers<[1], [1], [0], [0], [0, 0, 1, 0], [], []>} : vector<8x32xbf16>, vector<8x32xbf16>, vector<8x8xf32> -> vector<8x8xf32>
    %112 = math.exp %111 : vector<8x8xf32>
    %cst_39 = arith.constant dense<0.000000e+00> : vector<8xf32>
    %113 = vector.multi_reduction <add>, %112, %cst_39 [1] : vector<8x8xf32> to vector<8xf32>
    %114 = vector.shape_cast %113 : vector<8xf32> to vector<8x1xf32>
    %cst_40 = arith.constant 9.99999993E-9 : f32
    %115 = vector.broadcast %cst_40 : f32 to vector<8x1xf32>
    %116 = arith.addf %114, %115 : vector<8x1xf32>
    %117 = tpu.reciprocal %116 {approx = true} : vector<8x1xf32> -> vector<8x1xf32>
    %118 = vector.broadcast %117 : vector<8x1xf32> to vector<8x8xf32>
    %119 = arith.mulf %112, %118 : vector<8x8xf32>
    %120 = arith.truncf %119 : vector<8x8xf32> to vector<8x8xbf16>
    %cst_41 = arith.constant dense<0.000000e+00> : vector<8x32xf32>
    %121 = tpu.matmul %120, %110, %cst_41 {dimension_numbers = #tpu.dot_dimension_numbers<[1], [0], [0], [1], [0, 0, 1, 1], [], []>} : vector<8x8xbf16>, vector<8x32xbf16>, vector<8x32xf32> -> vector<8x32xf32>
    %122 = vector.extract_strided_slice %11 {offsets = [8, 64], sizes = [8, 32], strides = [1, 1]} : vector<16x128xbf16> to vector<8x32xbf16>
    %123 = vector.extract_strided_slice %12 {offsets = [8, 64], sizes = [8, 32], strides = [1, 1]} : vector<16x128xbf16> to vector<8x32xbf16>
    %124 = vector.extract_strided_slice %13 {offsets = [8, 64], sizes = [8, 32], strides = [1, 1]} : vector<16x128xbf16> to vector<8x32xbf16>
    %cst_42 = arith.constant dense<0.000000e+00> : vector<8x8xf32>
    %125 = tpu.matmul %122, %123, %cst_42 {dimension_numbers = #tpu.dot_dimension_numbers<[1], [1], [0], [0], [0, 0, 1, 0], [], []>} : vector<8x32xbf16>, vector<8x32xbf16>, vector<8x8xf32> -> vector<8x8xf32>
    %126 = math.exp %125 : vector<8x8xf32>
    %cst_43 = arith.constant dense<0.000000e+00> : vector<8xf32>
    %127 = vector.multi_reduction <add>, %126, %cst_43 [1] : vector<8x8xf32> to vector<8xf32>
    %128 = vector.shape_cast %127 : vector<8xf32> to vector<8x1xf32>
    %cst_44 = arith.constant 9.99999993E-9 : f32
    %129 = vector.broadcast %cst_44 : f32 to vector<8x1xf32>
    %130 = arith.addf %128, %129 : vector<8x1xf32>
    %131 = tpu.reciprocal %130 {approx = true} : vector<8x1xf32> -> vector<8x1xf32>
    %132 = vector.broadcast %131 : vector<8x1xf32> to vector<8x8xf32>
    %133 = arith.mulf %126, %132 : vector<8x8xf32>
    %134 = arith.truncf %133 : vector<8x8xf32> to vector<8x8xbf16>
    %cst_45 = arith.constant dense<0.000000e+00> : vector<8x32xf32>
    %135 = tpu.matmul %134, %124, %cst_45 {dimension_numbers = #tpu.dot_dimension_numbers<[1], [0], [0], [1], [0, 0, 1, 1], [], []>} : vector<8x8xbf16>, vector<8x32xbf16>, vector<8x32xf32> -> vector<8x32xf32>
    %136 = vector.extract_strided_slice %11 {offsets = [8, 96], sizes = [8, 32], strides = [1, 1]} : vector<16x128xbf16> to vector<8x32xbf16>
    %137 = vector.extract_strided_slice %12 {offsets = [8, 96], sizes = [8, 32], strides = [1, 1]} : vector<16x128xbf16> to vector<8x32xbf16>
    %138 = vector.extract_strided_slice %13 {offsets = [8, 96], sizes = [8, 32], strides = [1, 1]} : vector<16x128xbf16> to vector<8x32xbf16>
    %cst_46 = arith.constant dense<0.000000e+00> : vector<8x8xf32>
    %139 = tpu.matmul %136, %137, %cst_46 {dimension_numbers = #tpu.dot_dimension_numbers<[1], [1], [0], [0], [0, 0, 1, 0], [], []>} : vector<8x32xbf16>, vector<8x32xbf16>, vector<8x8xf32> -> vector<8x8xf32>
    %140 = math.exp %139 : vector<8x8xf32>
    %cst_47 = arith.constant dense<0.000000e+00> : vector<8xf32>
    %141 = vector.multi_reduction <add>, %140, %cst_47 [1] : vector<8x8xf32> to vector<8xf32>
    %142 = vector.shape_cast %141 : vector<8xf32> to vector<8x1xf32>
    %cst_48 = arith.constant 9.99999993E-9 : f32
    %143 = vector.broadcast %cst_48 : f32 to vector<8x1xf32>
    %144 = arith.addf %142, %143 : vector<8x1xf32>
    %145 = tpu.reciprocal %144 {approx = true} : vector<8x1xf32> -> vector<8x1xf32>
    %146 = vector.broadcast %145 : vector<8x1xf32> to vector<8x8xf32>
    %147 = arith.mulf %140, %146 : vector<8x8xf32>
    %148 = arith.truncf %147 : vector<8x8xf32> to vector<8x8xbf16>
    %cst_49 = arith.constant dense<0.000000e+00> : vector<8x32xf32>
    %149 = tpu.matmul %148, %138, %cst_49 {dimension_numbers = #tpu.dot_dimension_numbers<[1], [0], [0], [1], [0, 0, 1, 1], [], []>} : vector<8x8xbf16>, vector<8x32xbf16>, vector<8x32xf32> -> vector<8x32xf32>
    %150 = tpu.concatenate %107, %121, %135, %149 in 1 : vector<8x32xf32>, vector<8x32xf32>, vector<8x32xf32>, vector<8x32xf32> -> vector<8x128xf32>
    %151 = arith.truncf %150 : vector<8x128xf32> to vector<8x128xbf16>
    %cst_50 = arith.constant dense<0.000000e+00> : vector<8x32xf32>
    %152 = tpu.matmul %151, %3, %cst_50 {dimension_numbers = #tpu.dot_dimension_numbers<[1], [0], [0], [1], [0, 0, 1, 1], [], []>} : vector<8x128xbf16>, vector<128x32xbf16>, vector<8x32xf32> -> vector<8x32xf32>
    %153 = vector.broadcast %4 : vector<1x32xf32> to vector<8x32xf32>
    %154 = arith.addf %152, %153 : vector<8x32xf32>
    %155 = math.tanh %154 : vector<8x32xf32>
    %156 = vector.broadcast %5 : vector<1x32xf32> to vector<8x32xf32>
    %157 = arith.mulf %155, %156 : vector<8x32xf32>
    %cst_51 = arith.constant dense<0.000000e+00> : vector<8xf32>
    %158 = vector.multi_reduction <add>, %157, %cst_51 [1] : vector<8x32xf32> to vector<8xf32>
    %159 = vector.shape_cast %158 : vector<8xf32> to vector<8x1xf32>
    %160 = vector.broadcast %6 : vector<1x1xf32> to vector<8x1xf32>
    %161 = arith.addf %159, %160 : vector<8x1xf32>
    %162 = math.exp %161 : vector<8x1xf32>
    %cst_52 = arith.constant dense<0.000000e+00> : vector<1xf32>
    %163 = vector.multi_reduction <add>, %162, %cst_52 [0] : vector<8x1xf32> to vector<1xf32>
    %164 = vector.shape_cast %163 : vector<1xf32> to vector<1x1xf32>
    %cst_53 = arith.constant 9.99999993E-9 : f32
    %165 = vector.broadcast %cst_53 : f32 to vector<1x1xf32>
    %166 = arith.addf %164, %165 : vector<1x1xf32>
    %167 = tpu.reciprocal %166 {approx = true} : vector<1x1xf32> -> vector<1x1xf32>
    %168 = vector.broadcast %167 : vector<1x1xf32> to vector<8x1xf32>
    %169 = arith.mulf %162, %168 : vector<8x1xf32>
    %170 = vector.broadcast %169 : vector<8x1xf32> to vector<8x128xf32>
    %171 = arith.mulf %150, %170 : vector<8x128xf32>
    %cst_54 = arith.constant dense<0.000000e+00> : vector<128xf32>
    %172 = vector.multi_reduction <add>, %171, %cst_54 [0] : vector<8x128xf32> to vector<128xf32>
    %173 = vector.shape_cast %172 : vector<128xf32> to vector<1x128xf32>
    %174 = tpu.concatenate %93, %173 in 0 : vector<1x128xf32>, vector<1x128xf32> -> vector<2x128xf32>
    %c0_55 = arith.constant 0 : index
    %c0_56 = arith.constant 0 : index
    %175 = vector.load %arg7[%c0_55, %c0_56] : memref<2x128xf32, #tpu.memory_space<vmem>>, vector<2x128xf32>
    tpu.vector_store %arg7[%c0_55, %c0_56], %174 {strides = array<i32>} : memref<2x128xf32, #tpu.memory_space<vmem>>, vector<2x128xf32>,
    return
  }
}

</mosaic_0001>

<llo_original>
// kernel: tpu_custom_call.1
$region0: #{tpu_custom_call.1}
  #allocation0 [shape = 'u32[]', space=smem, size = 0x4, offset = 0x4, fixed_abs, tag = 'smem constant byte address 0x4 - core index']
  #allocation1 [shape = 'u32[144,128]{1,0:T(1,128)}', space=vmem, size = 0x12000, scoped, tag = 'internal scratch']
  #allocation2 [shape = 'f32[1,1]{1,0:T(1,128)S(1)}', space=vmem, size = 0x200, scoped, tag = 'scoped memory for tpu_custom_call.1']
  %s0 = inlined_call_operand.vmem [shape: bf16[16,32], index: 0, kind: input, shape index: {}]
  %s1 = inlined_call_operand.vmem [shape: bf16[32,384], index: 1, kind: input, shape index: {}]
  %s2 = inlined_call_operand.vmem [shape: f32[1,384], index: 2, kind: input, shape index: {}]
  %s3 = inlined_call_operand.vmem [shape: bf16[128,32], index: 3, kind: input, shape index: {}]
  %s4 = inlined_call_operand.vmem [shape: f32[1,32], index: 4, kind: input, shape index: {}]
  %s5 = inlined_call_operand.vmem [shape: f32[1,32], index: 5, kind: input, shape index: {}]
  %s6 = inlined_call_operand.<no memory space> [shape: f32[1,1], index: 6, kind: input, shape index: {}]
  %s7 = inlined_call_operand.hbm [shape: f32[2,128], index: 7, kind: output, shape index: {}]
  %s8 = sld [smem:[#allocation0]]
  $region38: #{tpu_custom_call.1} parent=0
    _
  %s10 = ssub.s32 1, %s8
  %s11 = scalar_select 0, %s10, %s8
  %v12 = vstv %s6
  %13 = vst [vmem:[#allocation2] sm:$0x1] %v12
  $region1: #{tpu_custom_call.1} parent=0
    #allocation3 [shape = 'u8[1024]{0}', space=vmem, size = 0x400, scoped, tag = 'output window, operand 0, single buffered']
    #allocation4 [shape = 's32[1]{0}', space=sflag, size = 0x4, scoped, tag = 'scoped memory for tpu_custom_call.1']
    %14 = vsyncpa [#allocation4], 0
    // Predicated region
    $region2: #{tpu_custom_call.1} parent=1 // pred_check
      _
    $region3: #{tpu_custom_call.1} parent=1 // pred_check_branch
      %16 = sbr.rel (0) target = $region5
    $region4: #{tpu_custom_call.1} parent=1 // pred_region
      _
    $region5: #{tpu_custom_call.1} parent=1 // pred_fallthru
      _
    // Predicated region
    $region6: #{tpu_custom_call.1} parent=1 // pred_check
      _
    $region7: #{tpu_custom_call.1} parent=1 // pred_check_branch
      %18 = sbr.rel (0) target = $region9
    $region8: #{tpu_custom_call.1} parent=1 // pred_region
      _
    $region9: #{tpu_custom_call.1} parent=1 // pred_fallthru
      _
    // Predicated region
    $region10: #{tpu_custom_call.1} parent=1 // pred_check
      _
    $region11: #{tpu_custom_call.1} parent=1 // pred_check_branch
      %20 = sbr.rel (0) target = $region13
    $region12: #{tpu_custom_call.1} parent=1 // pred_region
      _
    $region13: #{tpu_custom_call.1} parent=1 // pred_fallthru
      _
    // Predicated region
    $region14: #{tpu_custom_call.1} parent=1 // pred_check
      _
    $region15: #{tpu_custom_call.1} parent=1 // pred_check_branch
      %22 = sbr.rel (0) target = $region17
    $region16: #{tpu_custom_call.1} parent=1 // pred_region
      _
    $region17: #{tpu_custom_call.1} parent=1 // pred_fallthru
      _
    // Predicated region
    $region18: #{tpu_custom_call.1} parent=1 // pred_check
      _
    $region19: #{tpu_custom_call.1} parent=1 // pred_check_branch
      %24 = sbr.rel (0) target = $region21
    $region20: #{tpu_custom_call.1} parent=1 // pred_region
      _
    $region21: #{tpu_custom_call.1} parent=1 // pred_fallthru
      _
    // Predicated region
    $region22: #{tpu_custom_call.1} parent=1 // pred_check
      _
    $region23: #{tpu_custom_call.1} parent=1 // pred_check_branch
      %26 = sbr.rel (0) target = $region25
    $region24: #{tpu_custom_call.1} parent=1 // pred_region
      _
    $region25: #{tpu_custom_call.1} parent=1 // pred_fallthru
      _
    // Predicated region
    $region26: #{tpu_custom_call.1} parent=1 // pred_check
      _
    $region27: #{tpu_custom_call.1} parent=1 // pred_check_branch
      %28 = sbr.rel (0) target = $region29
    $region28: #{tpu_custom_call.1} parent=1 // pred_region
      _
    $region29: #{tpu_custom_call.1} parent=1 // pred_fallthru
      _
    %v30 = vld [vmem:[%s0] sm:$0xf]
    %v31 = vld [vmem:[%s0 + $0x4] sm:$0xf]
    %v32 = vld [vmem:[%s1] sm:$0xff]
    %v33 = vld [vmem:[%s1 + $0x8] sm:$0xf]
    %v34 = vld [vmem:[%s1 + $0xc] sm:$0xff]
    %v35 = vld [vmem:[%s1 + $0x14] sm:$0xf]
    %v36 = vld [vmem:[%s1 + $0x18] sm:$0xff]
    %v37 = vld [vmem:[%s1 + $0x20] sm:$0xf]
    %v38 = vld [vmem:[%s1 + $0x24] sm:$0xff]
    %v39 = vld [vmem:[%s1 + $0x2c] sm:$0xf]
    %v40 = vld [vmem:[%s2] sm:$0x7]
    %v41 = vld [vmem:[%s3] sm:$0xf]
    %v42 = vld [vmem:[%s3 + $0x4] sm:$0xf]
    %v43 = vld [vmem:[%s3 + $0x8] sm:$0xf]
    %v44 = vld [vmem:[%s3 + $0xc] sm:$0xf]
    %v45 = vld [vmem:[%s3 + $0x10] sm:$0xf]
    %v46 = vld [vmem:[%s3 + $0x14] sm:$0xf]
    %v47 = vld [vmem:[%s3 + $0x18] sm:$0xf]
    %v48 = vld [vmem:[%s3 + $0x1c] sm:$0xf]
    %v49 = vld [vmem:[%s3 + $0x20] sm:$0xf]
    %v50 = vld [vmem:[%s3 + $0x24] sm:$0xf]
    %v51 = vld [vmem:[%s3 + $0x28] sm:$0xf]
    %v52 = vld [vmem:[%s3 + $0x2c] sm:$0xf]
    %v53 = vld [vmem:[%s3 + $0x30] sm:$0xf]
    %v54 = vld [vmem:[%s3 + $0x34] sm:$0xf]
    %v55 = vld [vmem:[%s3 + $0x38] sm:$0xf]
    %v56 = vld [vmem:[%s3 + $0x3c] sm:$0xf]
    %v57 = vld [vmem:[%s4] sm:$0x1]
    %v58 = vld [vmem:[%s5] sm:$0x1]
    %v59 = vld [vmem:[#allocation2] sm:$0x1]
    %v61 = vlaneseq
    %v62 = vshrl.u32 %v61, 7
    %v63 = vsub.s32 0, %v62
    %v64 = vrot.slane %v40, %v63
    %v65 = vlaneseq
    %v66 = vshrl.u32 %v65, 7
    %v67 = vsub.s32 1, %v66
    %v68 = vrot.slane %v40, %v67
    %v69 = vlaneseq
    %v70 = vshrl.u32 %v69, 7
    %v71 = vsub.s32 2, %v70
    %v72 = vrot.slane %v40, %v71
    %v78 = vunpack.c.l.b16 %v30
    %v79 = vunpack.c.l.b16 %v31
    %v80 = vpack.c.b16 %v79, %v78
    %v89 = vunpack.c.l.b16 %v32
    %v90 = vunpack.c.h.b16 %v32
    %v91 = vunpack.c.l.b16 %v33
    %v92 = vunpack.c.l.b16 %v34
    %v93 = vunpack.c.h.b16 %v34
    %v94 = vunpack.c.l.b16 %v35
    %v95 = vunpack.c.l.b16 %v36
    %v96 = vunpack.c.h.b16 %v36
    %v97 = vunpack.c.l.b16 %v37
    %v98 = vunpack.c.l.b16 %v38
    %v99 = vunpack.c.h.b16 %v38
    %v100 = vunpack.c.l.b16 %v39
    %v101 = vpack.c.b16 %v92, %v89
    %v102 = vpack.c.b16 %v93, %v90
    %v103 = vpack.c.b16 %v94, %v91
    %v104 = vpack.c.b16 %v98, %v95
    %v105 = vpack.c.b16 %v99, %v96
    %v106 = vpack.c.b16 %v100, %v97
    %vm113 = vcmask 261120
    %v115 = vsel %vm113, %v80, 0
    %117 = vmatprep.subr.bf16.mxu0 %v102
    %118 = vmatpush1.bf16.msra.mxu0 %v101
    %119 = vmatprep.subr.bf16.mxu0 %v105
    %120 = vmatpush1.bf16.msra.mxu0 %v104
    %121 = vmatprep.subr.bf16.mxu0 0
    %122 = vmatpush1.bf16.msra.mxu0 0
    %123 = vmatprep.subr.bf16.mxu0 0
    %124 = vmatpush1.bf16.msra.mxu0 0
    %125 = vmatprep.subr.bf16.mxu0 0
    %126 = vmatpush1.bf16.msra.mxu0 0
    %127 = vmatprep.subr.bf16.mxu0 0
    %128 = vmatpush1.bf16.msra.mxu0 0
    %129 = vmatprep.subr.bf16.mxu0 0
    %130 = vmatpush1.bf16.msra.mxu0 0
    %131 = vmatprep.subr.bf16.mxu0 0
    %132 = vmatpush1.bf16.msra.mxu0 0
    %133 = vmatprep.subr.bf16.mxu0 0
    %134 = vmatpush1.bf16.msra.mxu0 0
    %135 = vmatprep.subr.bf16.mxu0 0
    %136 = vmatpush1.bf16.msra.mxu0 0
    %137 = vmatprep.subr.bf16.mxu0 0
    %138 = vmatpush1.bf16.msra.mxu0 0
    %139 = vmatprep.subr.bf16.mxu0 0
    %140 = vmatpush1.bf16.msra.mxu0 0
    %141 = vmatprep.subr.bf16.mxu0 0
    %142 = vmatpush1.bf16.msra.mxu0 0
    %143 = vmatprep.subr.bf16.mxu0 0
    %144 = vmatpush1.bf16.msra.mxu0 0
    %145 = vmatprep.subr.bf16.mxu0 0
    %146 = vmatpush1.bf16.msra.mxu0 0
    %147 = vmatprep.subr.bf16.mxu0 0
    %148 = vmatpush1.bf16.msra.mxu0 0
    %149 = vmatprep.mubr.bf16.mxu0 0
    %150 = vmatmul.mubr.bf16.gmra.mrb[0].mxu0 %v115
    %v151 = vpop.f32.mrb[0].mxu0
    %v152 = vadd.f32 %v64, %v151
    %v153 = vpop.f32.mrb[0].mxu0
    %v154 = vadd.f32 %v68, %v153
    %v155 = vpop.f32.mrb[0].mxu0
    %v156 = vadd.f32 %v64, %v155
    %v157 = vpop.f32.mrb[0].mxu0
    %v158 = vadd.f32 %v68, %v157
    %159 = vdwg.mxu0
    %160 = vmatprep.subr.bf16.mxu0 0
    %161 = vmatpush1.bf16.msra.mxu0 %v103
    %162 = vmatprep.subr.bf16.mxu0 0
    %163 = vmatpush1.bf16.msra.mxu0 %v106
    %164 = vmatprep.subr.bf16.mxu0 0
    %165 = vmatpush1.bf16.msra.mxu0 0
    %166 = vmatprep.subr.bf16.mxu0 0
    %167 = vmatpush1.bf16.msra.mxu0 0
    %168 = vmatprep.subr.bf16.mxu0 0
    %169 = vmatpush1.bf16.msra.mxu0 0
    %170 = vmatprep.subr.bf16.mxu0 0
    %171 = vmatpush1.bf16.msra.mxu0 0
    %172 = vmatprep.subr.bf16.mxu0 0
    %173 = vmatpush1.bf16.msra.mxu0 0
    %174 = vmatprep.subr.bf16.mxu0 0
    %175 = vmatpush1.bf16.msra.mxu0 0
    %176 = vmatprep.subr.bf16.mxu0 0
    %177 = vmatpush1.bf16.msra.mxu0 0
    %178 = vmatprep.subr.bf16.mxu0 0
    %179 = vmatpush1.bf16.msra.mxu0 0
    %180 = vmatprep.subr.bf16.mxu0 0
    %181 = vmatpush1.bf16.msra.mxu0 0
    %182 = vmatprep.subr.bf16.mxu0 0
    %183 = vmatpush1.bf16.msra.mxu0 0
    %184 = vmatprep.subr.bf16.mxu0 0
    %185 = vmatpush1.bf16.msra.mxu0 0
    %186 = vmatprep.subr.bf16.mxu0 0
    %187 = vmatpush1.bf16.msra.mxu0 0
    %188 = vmatprep.subr.bf16.mxu0 0
    %189 = vmatpush1.bf16.msra.mxu0 0
    %190 = vmatprep.subr.bf16.mxu0 0
    %191 = vmatpush1.bf16.msra.mxu0 0
    %192 = vmatprep.mubr.bf16.mxu0 0
    %193 = vmatmul.mubr.bf16.gmra.mrb[0].mxu0 %v115
    %v194 = vpop.f32.mrb[0].mxu0
    %v195 = vadd.f32 %v72, %v194
    %v196 = vpop.f32.mrb[0].mxu0
    %v197 = vpop.f32.mrb[0].mxu0
    %v198 = vadd.f32 %v72, %v197
    %v199 = vpop.f32.mrb[0].mxu0
    %200 = vdwg.mxu0
    %v201 = vpack.c.bf16 %v156, %v152
    %v202 = vpack.c.bf16 %v158, %v154
    %v203 = vpack.c.bf16 %v198, %v195
    %v205 = vsel %vm113, %v201, 0
    %v208 = vsel %vm113, %v202, 0
    %210 = vmatprep.subr.bf16.mxu0 0
    %211 = vmatpush1.bf16.xpose.msra.mxu0 %v208
    %212 = vmatprep.subr.bf16.mxu0 0
    %213 = vmatpush1.bf16.xpose.msra.mxu0 0
    %214 = vmatprep.subr.bf16.mxu0 0
    %215 = vmatpush1.bf16.xpose.msra.mxu0 0
    %216 = vmatprep.subr.bf16.mxu0 0
    %217 = vmatpush1.bf16.xpose.msra.mxu0 0
    %218 = vmatprep.subr.bf16.mxu0 0
    %219 = vmatpush1.bf16.xpose.msra.mxu0 0
    %220 = vmatprep.subr.bf16.mxu0 0
    %221 = vmatpush1.bf16.xpose.msra.mxu0 0
    %222 = vmatprep.subr.bf16.mxu0 0
    %223 = vmatpush1.bf16.xpose.msra.mxu0 0
    %224 = vmatprep.subr.bf16.mxu0 0
    %225 = vmatpush1.bf16.xpose.msra.mxu0 0
    %226 = vmatprep.subr.bf16.mxu0 0
    %227 = vmatpush1.bf16.xpose.msra.mxu0 0
    %228 = vmatprep.subr.bf16.mxu0 0
    %229 = vmatpush1.bf16.xpose.msra.mxu0 0
    %230 = vmatprep.subr.bf16.mxu0 0
    %231 = vmatpush1.bf16.xpose.msra.mxu0 0
    %232 = vmatprep.subr.bf16.mxu0 0
    %233 = vmatpush1.bf16.xpose.msra.mxu0 0
    %234 = vmatprep.subr.bf16.mxu0 0
    %235 = vmatpush1.bf16.xpose.msra.mxu0 0
    %236 = vmatprep.subr.bf16.mxu0 0
    %237 = vmatpush1.bf16.xpose.msra.mxu0 0
    %238 = vmatprep.subr.bf16.mxu0 0
    %239 = vmatpush1.bf16.xpose.msra.mxu0 0
    %240 = vmatprep.subr.bf16.mxu0 0
    %241 = vmatpush1.bf16.xpose.msra.mxu0 0
    %242 = vmatprep.mubr.bf16.mxu0 0
    %243 = vmatmul.mubr.bf16.gmra.mrb[0].mxu0 %v205
    %v244 = vpop.f32.mrb[0].mxu0
    %v245 = vadd.f32 0.0, %v244
    %v246 = vpop.f32.mrb[0].mxu0
    %v247 = vpop.f32.mrb[0].mxu0
    %v248 = vpop.f32.mrb[0].mxu0
    %249 = vdwg.mxu0
    %v250 = vmul.f32 %v245, 1.442695
    %v251 = vpow.pop %v250
    %vm252 = vcmask 64512
    %v253 = vsel %vm252, %v251, 0.0
    %254 = vadd.xlane.f32.xlu0 %v253
    %v255 = vpop.xlane.xlu0 %254
    %v256 = vadd.f32 %v255, 1e-08
    %v257 = vrcp.pop %v256
    %v258 = vmul.f32 %v251, %v257
    %v259 = vpack.c.bf16 %v258, %v258
    %v261 = vsel %vm252, %v259, 0
    %vm263 = vcmask 1043456
    %v265 = vsel %vm263, %v203, 0
    %267 = vmatprep.subr.bf16.mxu0 0
    %268 = vmatpush1.bf16.msra.mxu0 %v265
    %269 = vmatprep.subr.bf16.mxu0 0
    %270 = vmatpush1.bf16.msra.mxu0 0
    %271 = vmatprep.subr.bf16.mxu0 0
    %272 = vmatpush1.bf16.msra.mxu0 0
    %273 = vmatprep.subr.bf16.mxu0 0
    %274 = vmatpush1.bf16.msra.mxu0 0
    %275 = vmatprep.subr.bf16.mxu0 0
    %276 = vmatpush1.bf16.msra.mxu0 0
    %277 = vmatprep.subr.bf16.mxu0 0
    %278 = vmatpush1.bf16.msra.mxu0 0
    %279 = vmatprep.subr.bf16.mxu0 0
    %280 = vmatpush1.bf16.msra.mxu0 0
    %281 = vmatprep.subr.bf16.mxu0 0
    %282 = vmatpush1.bf16.msra.mxu0 0
    %283 = vmatprep.subr.bf16.mxu0 0
    %284 = vmatpush1.bf16.msra.mxu0 0
    %285 = vmatprep.subr.bf16.mxu0 0
    %286 = vmatpush1.bf16.msra.mxu0 0
    %287 = vmatprep.subr.bf16.mxu0 0
    %288 = vmatpush1.bf16.msra.mxu0 0
    %289 = vmatprep.subr.bf16.mxu0 0
    %290 = vmatpush1.bf16.msra.mxu0 0
    %291 = vmatprep.subr.bf16.mxu0 0
    %292 = vmatpush1.bf16.msra.mxu0 0
    %293 = vmatprep.subr.bf16.mxu0 0
    %294 = vmatpush1.bf16.msra.mxu0 0
    %295 = vmatprep.subr.bf16.mxu0 0
    %296 = vmatpush1.bf16.msra.mxu0 0
    %297 = vmatprep.subr.bf16.mxu0 0
    %298 = vmatpush1.bf16.msra.mxu0 0
    %299 = vmatprep.mubr.bf16.mxu0 0
    %300 = vmatmul.mubr.bf16.gmra.mrb[0].mxu0 %v261
    %v301 = vpop.f32.mrb[0].mxu0
    %v302 = vadd.f32 0.0, %v301
    %v303 = vpop.f32.mrb[0].mxu0
    %v304 = vpop.f32.mrb[0].mxu0
    %v305 = vpop.f32.mrb[0].mxu0
    %306 = vdwg.mxu0
    %308 = vrot.lane.b32.xlu0 %v201, 96
    %v309 = vpop.permute.xlu0 %308
    %311 = vrot.lane.b32.xlu0 %v202, 96
    %v312 = vpop.permute.xlu0 %311
    %v314 = vsel %vm113, %v309, 0
    %v317 = vsel %vm113, %v312, 0
    %319 = vmatprep.subr.bf16.mxu0 0
    %320 = vmatpush1.bf16.xpose.msra.mxu0 %v317
    %321 = vmatprep.subr.bf16.mxu0 0
    %322 = vmatpush1.bf16.xpose.msra.mxu0 0
    %323 = vmatprep.subr.bf16.mxu0 0
    %324 = vmatpush1.bf16.xpose.msra.mxu0 0
    %325 = vmatprep.subr.bf16.mxu0 0
    %326 = vmatpush1.bf16.xpose.msra.mxu0 0
    %327 = vmatprep.subr.bf16.mxu0 0
    %328 = vmatpush1.bf16.xpose.msra.mxu0 0
    %329 = vmatprep.subr.bf16.mxu0 0
    %330 = vmatpush1.bf16.xpose.msra.mxu0 0
    %331 = vmatprep.subr.bf16.mxu0 0
    %332 = vmatpush1.bf16.xpose.msra.mxu0 0
    %333 = vmatprep.subr.bf16.mxu0 0
    %334 = vmatpush1.bf16.xpose.msra.mxu0 0
    %335 = vmatprep.subr.bf16.mxu0 0
    %336 = vmatpush1.bf16.xpose.msra.mxu0 0
    %337 = vmatprep.subr.bf16.mxu0 0
    %338 = vmatpush1.bf16.xpose.msra.mxu0 0
    %339 = vmatprep.subr.bf16.mxu0 0
    %340 = vmatpush1.bf16.xpose.msra.mxu0 0
    %341 = vmatprep.subr.bf16.mxu0 0
    %342 = vmatpush1.bf16.xpose.msra.mxu0 0
    %343 = vmatprep.subr.bf16.mxu0 0
    %344 = vmatpush1.bf16.xpose.msra.mxu0 0
    %345 = vmatprep.subr.bf16.mxu0 0
    %346 = vmatpush1.bf16.xpose.msra.mxu0 0
    %347 = vmatprep.subr.bf16.mxu0 0
    %348 = vmatpush1.bf16.xpose.msra.mxu0 0
    %349 = vmatprep.subr.bf16.mxu0 0
    %350 = vmatpush1.bf16.xpose.msra.mxu0 0
    %351 = vmatprep.mubr.bf16.mxu0 0
    %352 = vmatmul.mubr.bf16.gmra.mrb[0].mxu0 %v314
    %v353 = vpop.f32.mrb[0].mxu0
    %v354 = vadd.f32 0.0, %v353
    %v355 = vpop.f32.mrb[0].mxu0
    %v356 = vpop.f32.mrb[0].mxu0
    %v357 = vpop.f32.mrb[0].mxu0
    %358 = vdwg.mxu0
    %v359 = vmul.f32 %v354, 1.442695
    %v360 = vpow.pop %v359
    %v361 = vsel %vm252, %v360, 0.0
    %362 = vadd.xlane.f32.xlu0 %v361
    %v363 = vpop.xlane.xlu0 %362
    %v364 = vadd.f32 %v363, 1e-08
    %v365 = vrcp.pop %v364
    %v366 = vmul.f32 %v360, %v365
    %v367 = vpack.c.bf16 %v366, %v366
    %369 = vrot.lane.b32.xlu0 %v203, 96
    %v370 = vpop.permute.xlu0 %369
    %v372 = vsel %vm252, %v367, 0
    %v375 = vsel %vm263, %v370, 0
    %377 = vmatprep.subr.bf16.mxu0 0
    %378 = vmatpush1.bf16.msra.mxu0 %v375
    %379 = vmatprep.subr.bf16.mxu0 0
    %380 = vmatpush1.bf16.msra.mxu0 0
    %381 = vmatprep.subr.bf16.mxu0 0
    %382 = vmatpush1.bf16.msra.mxu0 0
    %383 = vmatprep.subr.bf16.mxu0 0
    %384 = vmatpush1.bf16.msra.mxu0 0
    %385 = vmatprep.subr.bf16.mxu0 0
    %386 = vmatpush1.bf16.msra.mxu0 0
    %387 = vmatprep.subr.bf16.mxu0 0
    %388 = vmatpush1.bf16.msra.mxu0 0
    %389 = vmatprep.subr.bf16.mxu0 0
    %390 = vmatpush1.bf16.msra.mxu0 0
    %391 = vmatprep.subr.bf16.mxu0 0
    %392 = vmatpush1.bf16.msra.mxu0 0
    %393 = vmatprep.subr.bf16.mxu0 0
    %394 = vmatpush1.bf16.msra.mxu0 0
    %395 = vmatprep.subr.bf16.mxu0 0
    %396 = vmatpush1.bf16.msra.mxu0 0
    %397 = vmatprep.subr.bf16.mxu0 0
    %398 = vmatpush1.bf16.msra.mxu0 0
    %399 = vmatprep.subr.bf16.mxu0 0
    %400 = vmatpush1.bf16.msra.mxu0 0
    %401 = vmatprep.subr.bf16.mxu0 0
    %402 = vmatpush1.bf16.msra.mxu0 0
    %403 = vmatprep.subr.bf16.mxu0 0
    %404 = vmatpush1.bf16.msra.mxu0 0
    %405 = vmatprep.subr.bf16.mxu0 0
    %406 = vmatpush1.bf16.msra.mxu0 0
    %407 = vmatprep.subr.bf16.mxu0 0
    %408 = vmatpush1.bf16.msra.mxu0 0
    %409 = vmatprep.mubr.bf16.mxu0 0
    %410 = vmatmul.mubr.bf16.gmra.mrb[0].mxu0 %v372
    %v411 = vpop.f32.mrb[0].mxu0
    %v412 = vadd.f32 0.0, %v411
    %v413 = vpop.f32.mrb[0].mxu0
    %v414 = vpop.f32.mrb[0].mxu0
    %v415 = vpop.f32.mrb[0].mxu0
    %416 = vdwg.mxu0
    %417 = vrot.lane.b32.xlu0 %v201, 64
    %v418 = vpop.permute.xlu0 %417
    %419 = vrot.lane.b32.xlu0 %v202, 64
    %v420 = vpop.permute.xlu0 %419
    %v422 = vsel %vm113, %v418, 0
    %v425 = vsel %vm113, %v420, 0
    %427 = vmatprep.subr.bf16.mxu0 0
    %428 = vmatpush1.bf16.xpose.msra.mxu0 %v425
    %429 = vmatprep.subr.bf16.mxu0 0
    %430 = vmatpush1.bf16.xpose.msra.mxu0 0
    %431 = vmatprep.subr.bf16.mxu0 0
    %432 = vmatpush1.bf16.xpose.msra.mxu0 0
    %433 = vmatprep.subr.bf16.mxu0 0
    %434 = vmatpush1.bf16.xpose.msra.mxu0 0
    %435 = vmatprep.subr.bf16.mxu0 0
    %436 = vmatpush1.bf16.xpose.msra.mxu0 0
    %437 = vmatprep.subr.bf16.mxu0 0
    %438 = vmatpush1.bf16.xpose.msra.mxu0 0
    %439 = vmatprep.subr.bf16.mxu0 0
    %440 = vmatpush1.bf16.xpose.msra.mxu0 0
    %441 = vmatprep.subr.bf16.mxu0 0
    %442 = vmatpush1.bf16.xpose.msra.mxu0 0
    %443 = vmatprep.subr.bf16.mxu0 0
    %444 = vmatpush1.bf16.xpose.msra.mxu0 0
    %445 = vmatprep.subr.bf16.mxu0 0
    %446 = vmatpush1.bf16.xpose.msra.mxu0 0
    %447 = vmatprep.subr.bf16.mxu0 0
    %448 = vmatpush1.bf16.xpose.msra.mxu0 0
    %449 = vmatprep.subr.bf16.mxu0 0
    %450 = vmatpush1.bf16.xpose.msra.mxu0 0
    %451 = vmatprep.subr.bf16.mxu0 0
    %452 = vmatpush1.bf16.xpose.msra.mxu0 0
    %453 = vmatprep.subr.bf16.mxu0 0
    %454 = vmatpush1.bf16.xpose.msra.mxu0 0
    %455 = vmatprep.subr.bf16.mxu0 0
    %456 = vmatpush1.bf16.xpose.msra.mxu0 0
    %457 = vmatprep.subr.bf16.mxu0 0
    %458 = vmatpush1.bf16.xpose.msra.mxu0 0
    %459 = vmatprep.mubr.bf16.mxu0 0
    %460 = vmatmul.mubr.bf16.gmra.mrb[0].mxu0 %v422
    %v461 = vpop.f32.mrb[0].mxu0
    %v462 = vadd.f32 0.0, %v461
    %v463 = vpop.f32.mrb[0].mxu0
    %v464 = vpop.f32.mrb[0].mxu0
    %v465 = vpop.f32.mrb[0].mxu0
    %466 = vdwg.mxu0
    %v467 = vmul.f32 %v462, 1.442695
    %v468 = vpow.pop %v467
    %v469 = vsel %vm252, %v468, 0.0
    %470 = vadd.xlane.f32.xlu0 %v469
    %v471 = vpop.xlane.xlu0 %470
    %v472 = vadd.f32 %v471, 1e-08
    %v473 = vrcp.pop %v472
    %v474 = vmul.f32 %v468, %v473
    %v475 = vpack.c.bf16 %v474, %v474
    %476 = vrot.lane.b32.xlu0 %v203, 64
    %v477 = vpop.permute.xlu0 %476
    %v479 = vsel %vm252, %v475, 0
    %v482 = vsel %vm263, %v477, 0
    %484 = vmatprep.subr.bf16.mxu0 0
    %485 = vmatpush1.bf16.msra.mxu0 %v482
    %486 = vmatprep.subr.bf16.mxu0 0
    %487 = vmatpush1.bf16.msra.mxu0 0
    %488 = vmatprep.subr.bf16.mxu0 0
    %489 = vmatpush1.bf16.msra.mxu0 0
    %490 = vmatprep.subr.bf16.mxu0 0
    %491 = vmatpush1.bf16.msra.mxu0 0
    %492 = vmatprep.subr.bf16.mxu0 0
    %493 = vmatpush1.bf16.msra.mxu0 0
    %494 = vmatprep.subr.bf16.mxu0 0
    %495 = vmatpush1.bf16.msra.mxu0 0
    %496 = vmatprep.subr.bf16.mxu0 0
    %497 = vmatpush1.bf16.msra.mxu0 0
    %498 = vmatprep.subr.bf16.mxu0 0
    %499 = vmatpush1.bf16.msra.mxu0 0
    %500 = vmatprep.subr.bf16.mxu0 0
    %501 = vmatpush1.bf16.msra.mxu0 0
    %502 = vmatprep.subr.bf16.mxu0 0
    %503 = vmatpush1.bf16.msra.mxu0 0
    %504 = vmatprep.subr.bf16.mxu0 0
    %505 = vmatpush1.bf16.msra.mxu0 0
    %506 = vmatprep.subr.bf16.mxu0 0
    %507 = vmatpush1.bf16.msra.mxu0 0
    %508 = vmatprep.subr.bf16.mxu0 0
    %509 = vmatpush1.bf16.msra.mxu0 0
    %510 = vmatprep.subr.bf16.mxu0 0
    %511 = vmatpush1.bf16.msra.mxu0 0
    %512 = vmatprep.subr.bf16.mxu0 0
    %513 = vmatpush1.bf16.msra.mxu0 0
    %514 = vmatprep.subr.bf16.mxu0 0
    %515 = vmatpush1.bf16.msra.mxu0 0
    %516 = vmatprep.mubr.bf16.mxu0 0
    %517 = vmatmul.mubr.bf16.gmra.mrb[0].mxu0 %v479
    %v518 = vpop.f32.mrb[0].mxu0
    %v519 = vadd.f32 0.0, %v518
    %v520 = vpop.f32.mrb[0].mxu0
    %v521 = vpop.f32.mrb[0].mxu0
    %v522 = vpop.f32.mrb[0].mxu0
    %523 = vdwg.mxu0
    %524 = vrot.lane.b32.xlu0 %v201, 32
    %v525 = vpop.permute.xlu0 %524
    %526 = vrot.lane.b32.xlu0 %v202, 32
    %v527 = vpop.permute.xlu0 %526
    %v529 = vsel %vm113, %v525, 0
    %v532 = vsel %vm113, %v527, 0
    %534 = vmatprep.subr.bf16.mxu0 0
    %535 = vmatpush1.bf16.xpose.msra.mxu0 %v532
    %536 = vmatprep.subr.bf16.mxu0 0
    %537 = vmatpush1.bf16.xpose.msra.mxu0 0
    %538 = vmatprep.subr.bf16.mxu0 0
    %539 = vmatpush1.bf16.xpose.msra.mxu0 0
    %540 = vmatprep.subr.bf16.mxu0 0
    %541 = vmatpush1.bf16.xpose.msra.mxu0 0
    %542 = vmatprep.subr.bf16.mxu0 0
    %543 = vmatpush1.bf16.xpose.msra.mxu0 0
    %544 = vmatprep.subr.bf16.mxu0 0
    %545 = vmatpush1.bf16.xpose.msra.mxu0 0
    %546 = vmatprep.subr.bf16.mxu0 0
    %547 = vmatpush1.bf16.xpose.msra.mxu0 0
    %548 = vmatprep.subr.bf16.mxu0 0
    %549 = vmatpush1.bf16.xpose.msra.mxu0 0
    %550 = vmatprep.subr.bf16.mxu0 0
    %551 = vmatpush1.bf16.xpose.msra.mxu0 0
    %552 = vmatprep.subr.bf16.mxu0 0
    %553 = vmatpush1.bf16.xpose.msra.mxu0 0
    %554 = vmatprep.subr.bf16.mxu0 0
    %555 = vmatpush1.bf16.xpose.msra.mxu0 0
    %556 = vmatprep.subr.bf16.mxu0 0
    %557 = vmatpush1.bf16.xpose.msra.mxu0 0
    %558 = vmatprep.subr.bf16.mxu0 0
    %559 = vmatpush1.bf16.xpose.msra.mxu0 0
    %560 = vmatprep.subr.bf16.mxu0 0
    %561 = vmatpush1.bf16.xpose.msra.mxu0 0
    %562 = vmatprep.subr.bf16.mxu0 0
    %563 = vmatpush1.bf16.xpose.msra.mxu0 0
    %564 = vmatprep.subr.bf16.mxu0 0
    %565 = vmatpush1.bf16.xpose.msra.mxu0 0
    %566 = vmatprep.mubr.bf16.mxu0 0
    %567 = vmatmul.mubr.bf16.gmra.mrb[0].mxu0 %v529
    %v568 = vpop.f32.mrb[0].mxu0
    %v569 = vadd.f32 0.0, %v568
    %v570 = vpop.f32.mrb[0].mxu0
    %v571 = vpop.f32.mrb[0].mxu0
    %v572 = vpop.f32.mrb[0].mxu0
    %573 = vdwg.mxu0
    %v574 = vmul.f32 %v569, 1.442695
    %v575 = vpow.pop %v574
    %v576 = vsel %vm252, %v575, 0.0
    %577 = vadd.xlane.f32.xlu0 %v576
    %v578 = vpop.xlane.xlu0 %577
    %v579 = vadd.f32 %v578, 1e-08
    %v580 = vrcp.pop %v579
    %v581 = vmul.f32 %v575, %v580
    %v582 = vpack.c.bf16 %v581, %v581
    %583 = vrot.lane.b32.xlu0 %v203, 32
    %v584 = vpop.permute.xlu0 %583
    %v586 = vsel %vm252, %v582, 0
    %v589 = vsel %vm263, %v584, 0
    %591 = vmatprep.subr.bf16.mxu0 0
    %592 = vmatpush1.bf16.msra.mxu0 %v589
    %593 = vmatprep.subr.bf16.mxu0 0
    %594 = vmatpush1.bf16.msra.mxu0 0
    %595 = vmatprep.subr.bf16.mxu0 0
    %596 = vmatpush1.bf16.msra.mxu0 0
    %597 = vmatprep.subr.bf16.mxu0 0
    %598 = vmatpush1.bf16.msra.mxu0 0
    %599 = vmatprep.subr.bf16.mxu0 0
    %600 = vmatpush1.bf16.msra.mxu0 0
    %601 = vmatprep.subr.bf16.mxu0 0
    %602 = vmatpush1.bf16.msra.mxu0 0
    %603 = vmatprep.subr.bf16.mxu0 0
    %604 = vmatpush1.bf16.msra.mxu0 0
    %605 = vmatprep.subr.bf16.mxu0 0
    %606 = vmatpush1.bf16.msra.mxu0 0
    %607 = vmatprep.subr.bf16.mxu0 0
    %608 = vmatpush1.bf16.msra.mxu0 0
    %609 = vmatprep.subr.bf16.mxu0 0
    %610 = vmatpush1.bf16.msra.mxu0 0
    %611 = vmatprep.subr.bf16.mxu0 0
    %612 = vmatpush1.bf16.msra.mxu0 0
    %613 = vmatprep.subr.bf16.mxu0 0
    %614 = vmatpush1.bf16.msra.mxu0 0
    %615 = vmatprep.subr.bf16.mxu0 0
    %616 = vmatpush1.bf16.msra.mxu0 0
    %617 = vmatprep.subr.bf16.mxu0 0
    %618 = vmatpush1.bf16.msra.mxu0 0
    %619 = vmatprep.subr.bf16.mxu0 0
    %620 = vmatpush1.bf16.msra.mxu0 0
    %621 = vmatprep.subr.bf16.mxu0 0
    %622 = vmatpush1.bf16.msra.mxu0 0
    %623 = vmatprep.mubr.bf16.mxu0 0
    %624 = vmatmul.mubr.bf16.gmra.mrb[0].mxu0 %v586
    %v625 = vpop.f32.mrb[0].mxu0
    %v626 = vadd.f32 0.0, %v625
    %v627 = vpop.f32.mrb[0].mxu0
    %v628 = vpop.f32.mrb[0].mxu0
    %v629 = vpop.f32.mrb[0].mxu0
    %630 = vdwg.mxu0
    %632 = vrot.lane.b32.xlu0 %v412, 32
    %v633 = vpop.permute.xlu0 %632
    %636 = vrot.lane.b32.xlu0 %v519, 64
    %v637 = vpop.permute.xlu0 %636
    %640 = vrot.lane.b32.xlu0 %v626, 96
    %v641 = vpop.permute.xlu0 %640
    %v643 = vsel %vm113, %v302, %v633
    %vm644 = vcmask 523264
    %v645 = vsel %vm644, %v643, %v637
    %vm646 = vcmask 785408
    %v647 = vsel %vm646, %v645, %v641
    %v648 = vpack.c.bf16 %v647, %v647
    %v650 = vlaneseq
    %v651 = vshrl.u32 %v650, 7
    %v652 = vsub.s32 0, %v651
    %v653 = vrot.slane %v57, %v652
    %v671 = vunpack.c.l.b16 %v41
    %v672 = vunpack.c.l.b16 %v42
    %v673 = vunpack.c.l.b16 %v43
    %v674 = vunpack.c.l.b16 %v44
    %v675 = vunpack.c.l.b16 %v45
    %v676 = vunpack.c.l.b16 %v46
    %v677 = vunpack.c.l.b16 %v47
    %v678 = vunpack.c.l.b16 %v48
    %v679 = vunpack.c.l.b16 %v49
    %v680 = vunpack.c.l.b16 %v50
    %v681 = vunpack.c.l.b16 %v51
    %v682 = vunpack.c.l.b16 %v52
    %v683 = vunpack.c.l.b16 %v53
    %v684 = vunpack.c.l.b16 %v54
    %v685 = vunpack.c.l.b16 %v55
    %v686 = vunpack.c.l.b16 %v56
    %v687 = vpack.c.b16 %v672, %v671
    %v688 = vpack.c.b16 %v674, %v673
    %v689 = vpack.c.b16 %v676, %v675
    %v690 = vpack.c.b16 %v678, %v677
    %v691 = vpack.c.b16 %v680, %v679
    %v692 = vpack.c.b16 %v682, %v681
    %v693 = vpack.c.b16 %v684, %v683
    %v694 = vpack.c.b16 %v686, %v685
    %703 = vmatprep.subr.bf16.mxu0 0
    %704 = vmatpush1.bf16.msra.mxu0 %v687
    %705 = vmatprep.subr.bf16.mxu0 0
    %706 = vmatpush1.bf16.msra.mxu0 %v688
    %707 = vmatprep.subr.bf16.mxu0 0
    %708 = vmatpush1.bf16.msra.mxu0 %v689
    %709 = vmatprep.subr.bf16.mxu0 0
    %710 = vmatpush1.bf16.msra.mxu0 %v690
    %711 = vmatprep.subr.bf16.mxu0 0
    %712 = vmatpush1.bf16.msra.mxu0 %v691
    %713 = vmatprep.subr.bf16.mxu0 0
    %714 = vmatpush1.bf16.msra.mxu0 %v692
    %715 = vmatprep.subr.bf16.mxu0 0
    %716 = vmatpush1.bf16.msra.mxu0 %v693
    %717 = vmatprep.subr.bf16.mxu0 0
    %718 = vmatpush1.bf16.msra.mxu0 %v694
    %719 = vmatprep.subr.bf16.mxu0 0
    %720 = vmatpush1.bf16.msra.mxu0 0
    %721 = vmatprep.subr.bf16.mxu0 0
    %722 = vmatpush1.bf16.msra.mxu0 0
    %723 = vmatprep.subr.bf16.mxu0 0
    %724 = vmatpush1.bf16.msra.mxu0 0
    %725 = vmatprep.subr.bf16.mxu0 0
    %726 = vmatpush1.bf16.msra.mxu0 0
    %727 = vmatprep.subr.bf16.mxu0 0
    %728 = vmatpush1.bf16.msra.mxu0 0
    %729 = vmatprep.subr.bf16.mxu0 0
    %730 = vmatpush1.bf16.msra.mxu0 0
    %731 = vmatprep.subr.bf16.mxu0 0
    %732 = vmatpush1.bf16.msra.mxu0 0
    %733 = vmatprep.subr.bf16.mxu0 0
    %734 = vmatpush1.bf16.msra.mxu0 0
    %735 = vmatprep.mubr.bf16.mxu0 0
    %736 = vmatmul.mubr.bf16.gmra.mrb[0].mxu0 %v648
    %v737 = vpop.f32.mrb[0].mxu0
    %v738 = vadd.f32 %v653, %v737
    %v739 = vpop.f32.mrb[0].mxu0
    %v740 = vpop.f32.mrb[0].mxu0
    %v741 = vpop.f32.mrb[0].mxu0
    %742 = vdwg.mxu0
    %v743 = vtanh.pop %v738
    %v745 = vlaneseq
    %v746 = vshrl.u32 %v745, 7
    %v747 = vsub.s32 0, %v746
    %v748 = vrot.slane %v58, %v747
    %v750 = vmul.f32 %v743, %v748
    %v751 = vsel %vm113, %v750, 0.0
    %752 = vadd.xlane.f32.xlu0 %v751
    %v753 = vpop.xlane.xlu0 %752
    %v755 = vlaneseq
    %v756 = vshrl.u32 %v755, 7
    %v757 = vsub.s32 0, %v756
    %v758 = vrot.slane %v59, %v757
    %v760 = vadd.f32 %v753, %v758
    %v761 = vmul.f32 %v760, 1.442695
    %v762 = vpow.pop %v761
    %vm763 = vcmask 7168
    %v764 = vsel %vm763, %v762, 0.0
    %v765 = vrot.slane %v764, 4
    %v766 = vadd.f32 %v764, %v765
    %v767 = vrot.slane %v766, 2
    %v768 = vadd.f32 %v766, %v767
    %v769 = vrot.slane %v768, 1
    %v770 = vadd.f32 %v768, %v769
    %v771 = vadd.f32 %v770, 1e-08
    %v772 = vrcp.pop %v771
    %v773 = vmul.f32 %v762, %v772
    %775 = vset.pattern.permute.xlu0 0
    %776 = vperm.xlu0 %775, %v773
    %v777 = vpop.permute.xlu0 %776
    %v779 = vmul.f32 %v647, %v777
    %v780 = vrot.slane %v779, 4
    %v781 = vadd.f32 %v779, %v780
    %v782 = vrot.slane %v781, 2
    %v783 = vadd.f32 %v781, %v782
    %v784 = vrot.slane %v783, 1
    %v785 = vadd.f32 %v783, %v784
    %v786 = vrot.slane %v201, 4
    %v787 = vrot.slane %v202, 4
    %v789 = vsel %vm113, %v786, 0
    %v792 = vsel %vm113, %v787, 0
    %794 = vmatprep.subr.bf16.mxu0 0
    %795 = vmatpush1.bf16.xpose.msra.mxu0 %v792
    %796 = vmatprep.subr.bf16.mxu0 0
    %797 = vmatpush1.bf16.xpose.msra.mxu0 0
    %798 = vmatprep.subr.bf16.mxu0 0
    %799 = vmatpush1.bf16.xpose.msra.mxu0 0
    %800 = vmatprep.subr.bf16.mxu0 0
    %801 = vmatpush1.bf16.xpose.msra.mxu0 0
    %802 = vmatprep.subr.bf16.mxu0 0
    %803 = vmatpush1.bf16.xpose.msra.mxu0 0
    %804 = vmatprep.subr.bf16.mxu0 0
    %805 = vmatpush1.bf16.xpose.msra.mxu0 0
    %806 = vmatprep.subr.bf16.mxu0 0
    %807 = vmatpush1.bf16.xpose.msra.mxu0 0
    %808 = vmatprep.subr.bf16.mxu0 0
    %809 = vmatpush1.bf16.xpose.msra.mxu0 0
    %810 = vmatprep.subr.bf16.mxu0 0
    %811 = vmatpush1.bf16.xpose.msra.mxu0 0
    %812 = vmatprep.subr.bf16.mxu0 0
    %813 = vmatpush1.bf16.xpose.msra.mxu0 0
    %814 = vmatprep.subr.bf16.mxu0 0
    %815 = vmatpush1.bf16.xpose.msra.mxu0 0
    %816 = vmatprep.subr.bf16.mxu0 0
    %817 = vmatpush1.bf16.xpose.msra.mxu0 0
    %818 = vmatprep.subr.bf16.mxu0 0
    %819 = vmatpush1.bf16.xpose.msra.mxu0 0
    %820 = vmatprep.subr.bf16.mxu0 0
    %821 = vmatpush1.bf16.xpose.msra.mxu0 0
    %822 = vmatprep.subr.bf16.mxu0 0
    %823 = vmatpush1.bf16.xpose.msra.mxu0 0
    %824 = vmatprep.subr.bf16.mxu0 0
    %825 = vmatpush1.bf16.xpose.msra.mxu0 0
    %826 = vmatprep.mubr.bf16.mxu0 0
    %827 = vmatmul.mubr.bf16.gmra.mrb[0].mxu0 %v789
    %v828 = vpop.f32.mrb[0].mxu0
    %v829 = vadd.f32 0.0, %v828
    %v830 = vpop.f32.mrb[0].mxu0
    %v831 = vpop.f32.mrb[0].mxu0
    %v832 = vpop.f32.mrb[0].mxu0
    %833 = vdwg.mxu0
    %v834 = vmul.f32 %v829, 1.442695
    %v835 = vpow.pop %v834
    %v836 = vsel %vm252, %v835, 0.0
    %837 = vadd.xlane.f32.xlu0 %v836
    %v838 = vpop.xlane.xlu0 %837
    %v839 = vadd.f32 %v838, 1e-08
    %v840 = vrcp.pop %v839
    %v841 = vmul.f32 %v835, %v840
    %v842 = vpack.c.bf16 %v841, %v841
    %v843 = vrot.slane %v203, 4
    %v845 = vsel %vm252, %v842, 0
    %v848 = vsel %vm263, %v843, 0
    %850 = vmatprep.subr.bf16.mxu0 0
    %851 = vmatpush1.bf16.msra.mxu0 %v848
    %852 = vmatprep.subr.bf16.mxu0 0
    %853 = vmatpush1.bf16.msra.mxu0 0
    %854 = vmatprep.subr.bf16.mxu0 0
    %855 = vmatpush1.bf16.msra.mxu0 0
    %856 = vmatprep.subr.bf16.mxu0 0
    %857 = vmatpush1.bf16.msra.mxu0 0
    %858 = vmatprep.subr.bf16.mxu0 0
    %859 = vmatpush1.bf16.msra.mxu0 0
    %860 = vmatprep.subr.bf16.mxu0 0
    %861 = vmatpush1.bf16.msra.mxu0 0
    %862 = vmatprep.subr.bf16.mxu0 0
    %863 = vmatpush1.bf16.msra.mxu0 0
    %864 = vmatprep.subr.bf16.mxu0 0
    %865 = vmatpush1.bf16.msra.mxu0 0
    %866 = vmatprep.subr.bf16.mxu0 0
    %867 = vmatpush1.bf16.msra.mxu0 0
    %868 = vmatprep.subr.bf16.mxu0 0
    %869 = vmatpush1.bf16.msra.mxu0 0
    %870 = vmatprep.subr.bf16.mxu0 0
    %871 = vmatpush1.bf16.msra.mxu0 0
    %872 = vmatprep.subr.bf16.mxu0 0
    %873 = vmatpush1.bf16.msra.mxu0 0
    %874 = vmatprep.subr.bf16.mxu0 0
    %875 = vmatpush1.bf16.msra.mxu0 0
    %876 = vmatprep.subr.bf16.mxu0 0
    %877 = vmatpush1.bf16.msra.mxu0 0
    %878 = vmatprep.subr.bf16.mxu0 0
    %879 = vmatpush1.bf16.msra.mxu0 0
    %880 = vmatprep.subr.bf16.mxu0 0
    %881 = vmatpush1.bf16.msra.mxu0 0
    %882 = vmatprep.mubr.bf16.mxu0 0
    %883 = vmatmul.mubr.bf16.gmra.mrb[0].mxu0 %v845
    %v884 = vpop.f32.mrb[0].mxu0
    %v885 = vadd.f32 0.0, %v884
    %v886 = vpop.f32.mrb[0].mxu0
    %v887 = vpop.f32.mrb[0].mxu0
    %v888 = vpop.f32.mrb[0].mxu0
    %889 = vdwg.mxu0
    %890 = vrot.lane.b32.xlu0 %v786, 96
    %v891 = vpop.permute.xlu0 %890
    %892 = vrot.lane.b32.xlu0 %v787, 96
    %v893 = vpop.permute.xlu0 %892
    %v895 = vsel %vm113, %v891, 0
    %v898 = vsel %vm113, %v893, 0
    %900 = vmatprep.subr.bf16.mxu0 0
    %901 = vmatpush1.bf16.xpose.msra.mxu0 %v898
    %902 = vmatprep.subr.bf16.mxu0 0
    %903 = vmatpush1.bf16.xpose.msra.mxu0 0
    %904 = vmatprep.subr.bf16.mxu0 0
    %905 = vmatpush1.bf16.xpose.msra.mxu0 0
    %906 = vmatprep.subr.bf16.mxu0 0
    %907 = vmatpush1.bf16.xpose.msra.mxu0 0
    %908 = vmatprep.subr.bf16.mxu0 0
    %909 = vmatpush1.bf16.xpose.msra.mxu0 0
    %910 = vmatprep.subr.bf16.mxu0 0
    %911 = vmatpush1.bf16.xpose.msra.mxu0 0
    %912 = vmatprep.subr.bf16.mxu0 0
    %913 = vmatpush1.bf16.xpose.msra.mxu0 0
    %914 = vmatprep.subr.bf16.mxu0 0
    %915 = vmatpush1.bf16.xpose.msra.mxu0 0
    %916 = vmatprep.subr.bf16.mxu0 0
    %917 = vmatpush1.bf16.xpose.msra.mxu0 0
    %918 = vmatprep.subr.bf16.mxu0 0
    %919 = vmatpush1.bf16.xpose.msra.mxu0 0
    %920 = vmatprep.subr.bf16.mxu0 0
    %921 = vmatpush1.bf16.xpose.msra.mxu0 0
    %922 = vmatprep.subr.bf16.mxu0 0
    %923 = vmatpush1.bf16.xpose.msra.mxu0 0
    %924 = vmatprep.subr.bf16.mxu0 0
    %925 = vmatpush1.bf16.xpose.msra.mxu0 0
    %926 = vmatprep.subr.bf16.mxu0 0
    %927 = vmatpush1.bf16.xpose.msra.mxu0 0
    %928 = vmatprep.subr.bf16.mxu0 0
    %929 = vmatpush1.bf16.xpose.msra.mxu0 0
    %930 = vmatprep.subr.bf16.mxu0 0
    %931 = vmatpush1.bf16.xpose.msra.mxu0 0
    %932 = vmatprep.mubr.bf16.mxu0 0
    %933 = vmatmul.mubr.bf16.gmra.mrb[0].mxu0 %v895
    %v934 = vpop.f32.mrb[0].mxu0
    %v935 = vadd.f32 0.0, %v934
    %v936 = vpop.f32.mrb[0].mxu0
    %v937 = vpop.f32.mrb[0].mxu0
    %v938 = vpop.f32.mrb[0].mxu0
    %939 = vdwg.mxu0
    %v940 = vmul.f32 %v935, 1.442695
    %v941 = vpow.pop %v940
    %v942 = vsel %vm252, %v941, 0.0
    %943 = vadd.xlane.f32.xlu0 %v942
    %v944 = vpop.xlane.xlu0 %943
    %v945 = vadd.f32 %v944, 1e-08
    %v946 = vrcp.pop %v945
    %v947 = vmul.f32 %v941, %v946
    %v948 = vpack.c.bf16 %v947, %v947
    %949 = vrot.lane.b32.xlu0 %v843, 96
    %v950 = vpop.permute.xlu0 %949
    %v952 = vsel %vm252, %v948, 0
    %v955 = vsel %vm263, %v950, 0
    %957 = vmatprep.subr.bf16.mxu0 0
    %958 = vmatpush1.bf16.msra.mxu0 %v955
    %959 = vmatprep.subr.bf16.mxu0 0
    %960 = vmatpush1.bf16.msra.mxu0 0
    %961 = vmatprep.subr.bf16.mxu0 0
    %962 = vmatpush1.bf16.msra.mxu0 0
    %963 = vmatprep.subr.bf16.mxu0 0
    %964 = vmatpush1.bf16.msra.mxu0 0
    %965 = vmatprep.subr.bf16.mxu0 0
    %966 = vmatpush1.bf16.msra.mxu0 0
    %967 = vmatprep.subr.bf16.mxu0 0
    %968 = vmatpush1.bf16.msra.mxu0 0
    %969 = vmatprep.subr.bf16.mxu0 0
    %970 = vmatpush1.bf16.msra.mxu0 0
    %971 = vmatprep.subr.bf16.mxu0 0
    %972 = vmatpush1.bf16.msra.mxu0 0
    %973 = vmatprep.subr.bf16.mxu0 0
    %974 = vmatpush1.bf16.msra.mxu0 0
    %975 = vmatprep.subr.bf16.mxu0 0
    %976 = vmatpush1.bf16.msra.mxu0 0
    %977 = vmatprep.subr.bf16.mxu0 0
    %978 = vmatpush1.bf16.msra.mxu0 0
    %979 = vmatprep.subr.bf16.mxu0 0
    %980 = vmatpush1.bf16.msra.mxu0 0
    %981 = vmatprep.subr.bf16.mxu0 0
    %982 = vmatpush1.bf16.msra.mxu0 0
    %983 = vmatprep.subr.bf16.mxu0 0
    %984 = vmatpush1.bf16.msra.mxu0 0
    %985 = vmatprep.subr.bf16.mxu0 0
    %986 = vmatpush1.bf16.msra.mxu0 0
    %987 = vmatprep.subr.bf16.mxu0 0
    %988 = vmatpush1.bf16.msra.mxu0 0
    %989 = vmatprep.mubr.bf16.mxu0 0
    %990 = vmatmul.mubr.bf16.gmra.mrb[0].mxu0 %v952
    %v991 = vpop.f32.mrb[0].mxu0
    %v992 = vadd.f32 0.0, %v991
    %v993 = vpop.f32.mrb[0].mxu0
    %v994 = vpop.f32.mrb[0].mxu0
    %v995 = vpop.f32.mrb[0].mxu0
    %996 = vdwg.mxu0
    %997 = vrot.lane.b32.xlu0 %v786, 64
    %v998 = vpop.permute.xlu0 %997
    %999 = vrot.lane.b32.xlu0 %v787, 64
    %v1000 = vpop.permute.xlu0 %999
    %v1002 = vsel %vm113, %v998, 0
    %v1005 = vsel %vm113, %v1000, 0
    %1007 = vmatprep.subr.bf16.mxu0 0
    %1008 = vmatpush1.bf16.xpose.msra.mxu0 %v1005
    %1009 = vmatprep.subr.bf16.mxu0 0
    %1010 = vmatpush1.bf16.xpose.msra.mxu0 0
    %1011 = vmatprep.subr.bf16.mxu0 0
    %1012 = vmatpush1.bf16.xpose.msra.mxu0 0
    %1013 = vmatprep.subr.bf16.mxu0 0
    %1014 = vmatpush1.bf16.xpose.msra.mxu0 0
    %1015 = vmatprep.subr.bf16.mxu0 0
    %1016 = vmatpush1.bf16.xpose.msra.mxu0 0
    %1017 = vmatprep.subr.bf16.mxu0 0
    %1018 = vmatpush1.bf16.xpose.msra.mxu0 0
    %1019 = vmatprep.subr.bf16.mxu0 0
    %1020 = vmatpush1.bf16.xpose.msra.mxu0 0
    %1021 = vmatprep.subr.bf16.mxu0 0
    %1022 = vmatpush1.bf16.xpose.msra.mxu0 0
    %1023 = vmatprep.subr.bf16.mxu0 0
    %1024 = vmatpush1.bf16.xpose.msra.mxu0 0
    %1025 = vmatprep.subr.bf16.mxu0 0
    %1026 = vmatpush1.bf16.xpose.msra.mxu0 0
    %1027 = vmatprep.subr.bf16.mxu0 0
    %1028 = vmatpush1.bf16.xpose.msra.mxu0 0
    %1029 = vmatprep.subr.bf16.mxu0 0
    %1030 = vmatpush1.bf16.xpose.msra.mxu0 0
    %1031 = vmatprep.subr.bf16.mxu0 0
    %1032 = vmatpush1.bf16.xpose.msra.mxu0 0
    %1033 = vmatprep.subr.bf16.mxu0 0
    %1034 = vmatpush1.bf16.xpose.msra.mxu0 0
    %1035 = vmatprep.subr.bf16.mxu0 0
    %1036 = vmatpush1.bf16.xpose.msra.mxu0 0
    %1037 = vmatprep.subr.bf16.mxu0 0
    %1038 = vmatpush1.bf16.xpose.msra.mxu0 0
    %1039 = vmatprep.mubr.bf16.mxu0 0
    %1040 = vmatmul.mubr.bf16.gmra.mrb[0].mxu0 %v1002
    %v1041 = vpop.f32.mrb[0].mxu0
    %v1042 = vadd.f32 0.0, %v1041
    %v1043 = vpop.f32.mrb[0].mxu0
    %v1044 = vpop.f32.mrb[0].mxu0
    %v1045 = vpop.f32.mrb[0].mxu0
    %1046 = vdwg.mxu0
    %v1047 = vmul.f32 %v1042, 1.442695
    %v1048 = vpow.pop %v1047
    %v1049 = vsel %vm252, %v1048, 0.0
    %1050 = vadd.xlane.f32.xlu0 %v1049
    %v1051 = vpop.xlane.xlu0 %1050
    %v1052 = vadd.f32 %v1051, 1e-08
    %v1053 = vrcp.pop %v1052
    %v1054 = vmul.f32 %v1048, %v1053
    %v1055 = vpack.c.bf16 %v1054, %v1054
    %1056 = vrot.lane.b32.xlu0 %v843, 64
    %v1057 = vpop.permute.xlu0 %1056
    %v1059 = vsel %vm252, %v1055, 0
    %v1062 = vsel %vm263, %v1057, 0
    %1064 = vmatprep.subr.bf16.mxu0 0
    %1065 = vmatpush1.bf16.msra.mxu0 %v1062
    %1066 = vmatprep.subr.bf16.mxu0 0
    %1067 = vmatpush1.bf16.msra.mxu0 0
    %1068 = vmatprep.subr.bf16.mxu0 0
    %1069 = vmatpush1.bf16.msra.mxu0 0
    %1070 = vmatprep.subr.bf16.mxu0 0
    %1071 = vmatpush1.bf16.msra.mxu0 0
    %1072 = vmatprep.subr.bf16.mxu0 0
    %1073 = vmatpush1.bf16.msra.mxu0 0
    %1074 = vmatprep.subr.bf16.mxu0 0
    %1075 = vmatpush1.bf16.msra.mxu0 0
    %1076 = vmatprep.subr.bf16.mxu0 0
    %1077 = vmatpush1.bf16.msra.mxu0 0
    %1078 = vmatprep.subr.bf16.mxu0 0
    %1079 = vmatpush1.bf16.msra.mxu0 0
    %1080 = vmatprep.subr.bf16.mxu0 0
    %1081 = vmatpush1.bf16.msra.mxu0 0
    %1082 = vmatprep.subr.bf16.mxu0 0
    %1083 = vmatpush1.bf16.msra.mxu0 0
    %1084 = vmatprep.subr.bf16.mxu0 0
    %1085 = vmatpush1.bf16.msra.mxu0 0
    %1086 = vmatprep.subr.bf16.mxu0 0
    %1087 = vmatpush1.bf16.msra.mxu0 0
    %1088 = vmatprep.subr.bf16.mxu0 0
    %1089 = vmatpush1.bf16.msra.mxu0 0
    %1090 = vmatprep.subr.bf16.mxu0 0
    %1091 = vmatpush1.bf16.msra.mxu0 0
    %1092 = vmatprep.subr.bf16.mxu0 0
    %1093 = vmatpush1.bf16.msra.mxu0 0
    %1094 = vmatprep.subr.bf16.mxu0 0
    %1095 = vmatpush1.bf16.msra.mxu0 0
    %1096 = vmatprep.mubr.bf16.mxu0 0
    %1097 = vmatmul.mubr.bf16.gmra.mrb[0].mxu0 %v1059
    %v1098 = vpop.f32.mrb[0].mxu0
    %v1099 = vadd.f32 0.0, %v1098
    %v1100 = vpop.f32.mrb[0].mxu0
    %v1101 = vpop.f32.mrb[0].mxu0
    %v1102 = vpop.f32.mrb[0].mxu0
    %1103 = vdwg.mxu0
    %1104 = vrot.lane.b32.xlu0 %v786, 32
    %v1105 = vpop.permute.xlu0 %1104
    %1106 = vrot.lane.b32.xlu0 %v787, 32
    %v1107 = vpop.permute.xlu0 %1106
    %v1109 = vsel %vm113, %v1105, 0
    %v1112 = vsel %vm113, %v1107, 0
    %1114 = vmatprep.subr.bf16.mxu0 0
    %1115 = vmatpush1.bf16.xpose.msra.mxu0 %v1112
    %1116 = vmatprep.subr.bf16.mxu0 0
    %1117 = vmatpush1.bf16.xpose.msra.mxu0 0
    %1118 = vmatprep.subr.bf16.mxu0 0
    %1119 = vmatpush1.bf16.xpose.msra.mxu0 0
    %1120 = vmatprep.subr.bf16.mxu0 0
    %1121 = vmatpush1.bf16.xpose.msra.mxu0 0
    %1122 = vmatprep.subr.bf16.mxu0 0
    %1123 = vmatpush1.bf16.xpose.msra.mxu0 0
    %1124 = vmatprep.subr.bf16.mxu0 0
    %1125 = vmatpush1.bf16.xpose.msra.mxu0 0
    %1126 = vmatprep.subr.bf16.mxu0 0
    %1127 = vmatpush1.bf16.xpose.msra.mxu0 0
    %1128 = vmatprep.subr.bf16.mxu0 0
    %1129 = vmatpush1.bf16.xpose.msra.mxu0 0
    %1130 = vmatprep.subr.bf16.mxu0 0
    %1131 = vmatpush1.bf16.xpose.msra.mxu0 0
    %1132 = vmatprep.subr.bf16.mxu0 0
    %1133 = vmatpush1.bf16.xpose.msra.mxu0 0
    %1134 = vmatprep.subr.bf16.mxu0 0
    %1135 = vmatpush1.bf16.xpose.msra.mxu0 0
    %1136 = vmatprep.subr.bf16.mxu0 0
    %1137 = vmatpush1.bf16.xpose.msra.mxu0 0
    %1138 = vmatprep.subr.bf16.mxu0 0
    %1139 = vmatpush1.bf16.xpose.msra.mxu0 0
    %1140 = vmatprep.subr.bf16.mxu0 0
    %1141 = vmatpush1.bf16.xpose.msra.mxu0 0
    %1142 = vmatprep.subr.bf16.mxu0 0
    %1143 = vmatpush1.bf16.xpose.msra.mxu0 0
    %1144 = vmatprep.subr.bf16.mxu0 0
    %1145 = vmatpush1.bf16.xpose.msra.mxu0 0
    %1146 = vmatprep.mubr.bf16.mxu0 0
    %1147 = vmatmul.mubr.bf16.gmra.mrb[0].mxu0 %v1109
    %v1148 = vpop.f32.mrb[0].mxu0
    %v1149 = vadd.f32 0.0, %v1148
    %v1150 = vpop.f32.mrb[0].mxu0
    %v1151 = vpop.f32.mrb[0].mxu0
    %v1152 = vpop.f32.mrb[0].mxu0
    %1153 = vdwg.mxu0
    %v1154 = vmul.f32 %v1149, 1.442695
    %v1155 = vpow.pop %v1154
    %v1156 = vsel %vm252, %v1155, 0.0
    %1157 = vadd.xlane.f32.xlu0 %v1156
    %v1158 = vpop.xlane.xlu0 %1157
    %v1159 = vadd.f32 %v1158, 1e-08
    %v1160 = vrcp.pop %v1159
    %v1161 = vmul.f32 %v1155, %v1160
    %v1162 = vpack.c.bf16 %v1161, %v1161
    %1163 = vrot.lane.b32.xlu0 %v843, 32
    %v1164 = vpop.permute.xlu0 %1163
    %v1166 = vsel %vm252, %v1162, 0
    %v1169 = vsel %vm263, %v1164, 0
    %1171 = vmatprep.subr.bf16.mxu0 0
    %1172 = vmatpush1.bf16.msra.mxu0 %v1169
    %1173 = vmatprep.subr.bf16.mxu0 0
    %1174 = vmatpush1.bf16.msra.mxu0 0
    %1175 = vmatprep.subr.bf16.mxu0 0
    %1176 = vmatpush1.bf16.msra.mxu0 0
    %1177 = vmatprep.subr.bf16.mxu0 0
    %1178 = vmatpush1.bf16.msra.mxu0 0
    %1179 = vmatprep.subr.bf16.mxu0 0
    %1180 = vmatpush1.bf16.msra.mxu0 0
    %1181 = vmatprep.subr.bf16.mxu0 0
    %1182 = vmatpush1.bf16.msra.mxu0 0
    %1183 = vmatprep.subr.bf16.mxu0 0
    %1184 = vmatpush1.bf16.msra.mxu0 0
    %1185 = vmatprep.subr.bf16.mxu0 0
    %1186 = vmatpush1.bf16.msra.mxu0 0
    %1187 = vmatprep.subr.bf16.mxu0 0
    %1188 = vmatpush1.bf16.msra.mxu0 0
    %1189 = vmatprep.subr.bf16.mxu0 0
    %1190 = vmatpush1.bf16.msra.mxu0 0
    %1191 = vmatprep.subr.bf16.mxu0 0
    %1192 = vmatpush1.bf16.msra.mxu0 0
    %1193 = vmatprep.subr.bf16.mxu0 0
    %1194 = vmatpush1.bf16.msra.mxu0 0
    %1195 = vmatprep.subr.bf16.mxu0 0
    %1196 = vmatpush1.bf16.msra.mxu0 0
    %1197 = vmatprep.subr.bf16.mxu0 0
    %1198 = vmatpush1.bf16.msra.mxu0 0
    %1199 = vmatprep.subr.bf16.mxu0 0
    %1200 = vmatpush1.bf16.msra.mxu0 0
    %1201 = vmatprep.subr.bf16.mxu0 0
    %1202 = vmatpush1.bf16.msra.mxu0 0
    %1203 = vmatprep.mubr.bf16.mxu0 0
    %1204 = vmatmul.mubr.bf16.gmra.mrb[0].mxu0 %v1166
    %v1205 = vpop.f32.mrb[0].mxu0
    %v1206 = vadd.f32 0.0, %v1205
    %v1207 = vpop.f32.mrb[0].mxu0
    %v1208 = vpop.f32.mrb[0].mxu0
    %v1209 = vpop.f32.mrb[0].mxu0
    %1210 = vdwg.mxu0
    %1212 = vrot.lane.b32.xlu0 %v992, 32
    %v1213 = vpop.permute.xlu0 %1212
    %1216 = vrot.lane.b32.xlu0 %v1099, 64
    %v1217 = vpop.permute.xlu0 %1216
    %1220 = vrot.lane.b32.xlu0 %v1206, 96
    %v1221 = vpop.permute.xlu0 %1220
    %v1223 = vsel %vm113, %v885, %v1213
    %v1224 = vsel %vm644, %v1223, %v1217
    %v1225 = vsel %vm646, %v1224, %v1221
    %v1226 = vpack.c.bf16 %v1225, %v1225
    %1227 = vmatprep.subr.bf16.mxu0 0
    %1228 = vmatpush1.bf16.msra.mxu0 %v687
    %1229 = vmatprep.subr.bf16.mxu0 0
    %1230 = vmatpush1.bf16.msra.mxu0 %v688
    %1231 = vmatprep.subr.bf16.mxu0 0
    %1232 = vmatpush1.bf16.msra.mxu0 %v689
    %1233 = vmatprep.subr.bf16.mxu0 0
    %1234 = vmatpush1.bf16.msra.mxu0 %v690
    %1235 = vmatprep.subr.bf16.mxu0 0
    %1236 = vmatpush1.bf16.msra.mxu0 %v691
    %1237 = vmatprep.subr.bf16.mxu0 0
    %1238 = vmatpush1.bf16.msra.mxu0 %v692
    %1239 = vmatprep.subr.bf16.mxu0 0
    %1240 = vmatpush1.bf16.msra.mxu0 %v693
    %1241 = vmatprep.subr.bf16.mxu0 0
    %1242 = vmatpush1.bf16.msra.mxu0 %v694
    %1243 = vmatprep.subr.bf16.mxu0 0
    %1244 = vmatpush1.bf16.msra.mxu0 0
    %1245 = vmatprep.subr.bf16.mxu0 0
    %1246 = vmatpush1.bf16.msra.mxu0 0
    %1247 = vmatprep.subr.bf16.mxu0 0
    %1248 = vmatpush1.bf16.msra.mxu0 0
    %1249 = vmatprep.subr.bf16.mxu0 0
    %1250 = vmatpush1.bf16.msra.mxu0 0
    %1251 = vmatprep.subr.bf16.mxu0 0
    %1252 = vmatpush1.bf16.msra.mxu0 0
    %1253 = vmatprep.subr.bf16.mxu0 0
    %1254 = vmatpush1.bf16.msra.mxu0 0
    %1255 = vmatprep.subr.bf16.mxu0 0
    %1256 = vmatpush1.bf16.msra.mxu0 0
    %1257 = vmatprep.subr.bf16.mxu0 0
    %1258 = vmatpush1.bf16.msra.mxu0 0
    %1259 = vmatprep.mubr.bf16.mxu0 0
    %1260 = vmatmul.mubr.bf16.gmra.mrb[0].mxu0 %v1226
    %v1261 = vpop.f32.mrb[0].mxu0
    %v1262 = vadd.f32 %v653, %v1261
    %v1263 = vpop.f32.mrb[0].mxu0
    %v1264 = vpop.f32.mrb[0].mxu0
    %v1265 = vpop.f32.mrb[0].mxu0
    %1266 = vdwg.mxu0
    %v1267 = vtanh.pop %v1262
    %v1268 = vmul.f32 %v1267, %v748
    %v1269 = vsel %vm113, %v1268, 0.0
    %1270 = vadd.xlane.f32.xlu0 %v1269
    %v1271 = vpop.xlane.xlu0 %1270
    %v1272 = vadd.f32 %v1271, %v758
    %v1273 = vmul.f32 %v1272, 1.442695
    %v1274 = vpow.pop %v1273
    %v1275 = vsel %vm763, %v1274, 0.0
    %v1276 = vrot.slane %v1275, 4
    %v1277 = vadd.f32 %v1275, %v1276
    %v1278 = vrot.slane %v1277, 2
    %v1279 = vadd.f32 %v1277, %v1278
    %v1280 = vrot.slane %v1279, 1
    %v1281 = vadd.f32 %v1279, %v1280
    %v1282 = vadd.f32 %v1281, 1e-08
    %v1283 = vrcp.pop %v1282
    %v1284 = vmul.f32 %v1274, %v1283
    %1286 = vset.pattern.permute.xlu0 0
    %1287 = vperm.xlu0 %1286, %v1284
    %v1288 = vpop.permute.xlu0 %1287
    %v1290 = vmul.f32 %v1225, %v1288
    %v1291 = vrot.slane %v1290, 4
    %v1292 = vadd.f32 %v1290, %v1291
    %v1293 = vrot.slane %v1292, 2
    %v1294 = vadd.f32 %v1292, %v1293
    %v1295 = vrot.slane %v1294, 1
    %v1296 = vadd.f32 %v1294, %v1295
    %vm1297 = vcmask 1040384
    %v1298 = vsel %vm1297, %v785, %v1296
    %1299 = vst [vmem:[#allocation3] sm:$0x3] %v1298
    // Predicated region
    $region30: #{tpu_custom_call.1} parent=1 // pred_check
      _
    $region31: #{tpu_custom_call.1} parent=1 // pred_check_branch
      %1301 = sbr.rel (0) target = $region33
    $region32: #{tpu_custom_call.1} parent=1 // pred_region
      %s1303 = ssub.s32 32, 32
      %1304 = vsyncadd [#allocation4], %s1303
      %s1306 = sshll.u32 [#allocation3], 4
      %s1307 = int_to_ptr.vmem [resolvable:$true] %s1306
      %1309 = dma.vmem_to_hbm [thread:$0]  %s1307, 32, %s7, [#allocation4]
    $region33: #{tpu_custom_call.1} parent=1 // pred_fallthru
      _
    // Predicated region
    $region34: #{tpu_custom_call.1} parent=1 // pred_check
      _
    $region35: #{tpu_custom_call.1} parent=1 // pred_check_branch
      %1311 = sbr.rel (0) target = $region37
    $region36: #{tpu_custom_call.1} parent=1 // pred_region
      %1312 = dma.done [#allocation4], 32
    $region37: #{tpu_custom_call.1} parent=1 // pred_fallthru
      _
    %1313 = vsyncpa [#allocation4], 1

</llo_original>
